<compile_context>
chip_gen: v6e
topology: v6e:2x2x1
jax: 0.10.0
libtpu: 0.0.40
codegen_flags: <defaults>
</compile_context>

<pallas_src>
import functools

import jax
import jax.numpy as jnp
from jax.experimental import pallas as pl
from jax.experimental.pallas import tpu as pltpu

STATE_DIM = 16
HIDDEN_DIM = 500          # logical hidden dim (matches the PyTorch module)
HIDDEN_PAD = 512          # padded to a multiple of 128 lanes
INIT_W = 0.003
MAX_BATCH_TILE = 1024     # bigger tiles amortize per-grid-step overhead


def _round_up(x, m):
    return (x + m - 1) // m * m


def _default_mish_dtype():
    """bf16 elementwise chain on chips with bf16 VPU/EUP (v6e/v7x); f32 elsewhere."""
    try:
        kind = jax.devices()[0].device_kind.lower()
    except Exception:
        return jnp.float32
    if ("v6" in kind) or ("v7" in kind) or ("7x" in kind):
        return jnp.bfloat16
    return jnp.float32


# ----------------------------------------------------------------------------
# kernel
# ----------------------------------------------------------------------------
def _mish_fast(x):
    """mish(x) = min(x * tanh(softplus(x)), 6) with a single exp.

    tanh(softplus(x)) = e^x (e^x + 2) / (e^x (e^x + 2) + 2): one EUP exp per
    element plus an approx EUP reciprocal (f32) or a compiler-lowered divide
    (bf16); the extra mul/adds land in spare VALU slots.  The x > 20 branch
    mirrors torch.nn.functional.softplus's threshold and avoids e^x overflow
    (tanh(softplus(x)) -> 1 there).
    """
    e = jnp.exp(jnp.minimum(x, 20.0))
    n = e * (e + 2.0)
    if x.dtype == jnp.float32:
        t = n * pl.reciprocal(n + 2.0, approx=True)   # approx EUP recip (f32 path)
    else:
        t = n / (n + 2.0)                             # bf16 path: plain divide
    y = x * t
    y = jnp.where(x > 20.0, x, y)
    return jnp.minimum(y, 6.0)


def value_network_kernel(x_ref,
                         w1_ref, b1_ref,
                         w2_ref, b2_ref,
                         w23_ref, b23_ref,
                         w3_ref, b3_ref,
                         out_ref,
                         *, mish_dtype):
    # x tile: [TB, STATE_DIM] f32; w1 f32 (K=16 is negligible FLOPs);
    # w2/w2_3 bf16 (MXU-native); biases f32; all accumulation f32.
    x = x_ref[...]

    h = jnp.dot(x, w1_ref[...], preferred_element_type=jnp.float32) + b1_ref[...]
    h = _mish_fast(h.astype(mish_dtype))

    h = jnp.dot(h.astype(jnp.bfloat16), w2_ref[...],
                preferred_element_type=jnp.float32) + b2_ref[...]
    h = _mish_fast(h.astype(mish_dtype))

    h = jnp.dot(h.astype(jnp.bfloat16), w23_ref[...],
                preferred_element_type=jnp.float32) + b23_ref[...]
    h = _mish_fast(h.astype(mish_dtype))

    # Final [TB,512] @ [512,1] layer as VPU multiply + XLU lane reduction
    # (N=1 MXU matmul would use 1/256 of the array and emit masked stores).
    out = (jnp.sum(h.astype(jnp.float32) * w3_ref[...], axis=-1, keepdims=True)
           + b3_ref[0, 0])
    out_ref[...] = out.astype(out_ref.dtype)


# ----------------------------------------------------------------------------
# parameter handling
# ----------------------------------------------------------------------------
def init_params(key, state_dim=STATE_DIM, hidden_dim=HIDDEN_DIM, init_w=INIT_W):
    """Matches .uniform_(-init_w, init_w) on all weights/biases.

    Weights stored pre-transposed: [in_features, out_features], so the kernel
    computes y = x @ W + b (identical semantics to nn.Linear's x @ W.T + b).
    """
    ks = jax.random.split(key, 8)
    u = lambda k, shape: jax.random.uniform(
        k, shape, dtype=jnp.float32, minval=-init_w, maxval=init_w)
    return {
        "w1":   u(ks[0], (state_dim, hidden_dim)),
        "b1":   u(ks[1], (1, hidden_dim)),
        "w2":   u(ks[2], (hidden_dim, hidden_dim)),
        "b2":   u(ks[3], (1, hidden_dim)),
        "w2_3": u(ks[4], (hidden_dim, hidden_dim)),
        "b2_3": u(ks[5], (1, hidden_dim)),
        "w3":   u(ks[6], (hidden_dim, 1)),
        "b3":   u(ks[7], (1, 1)),
    }


def prepare_params(params, hidden_pad=HIDDEN_PAD, weight_dtype=jnp.bfloat16):
    """Zero-pad hidden 500 -> 512; keep w1 in f32 (K=16), cast the two large
    hidden x hidden weights to bf16 (done once, outside the kernel)."""
    # TODO(synk): optional int8 + per-channel-scale path for w2/w2_3 on v5e/v6e
    # (not applicable on v7x, which has no integer MXU).
    hidden = params["w1"].shape[1]
    ph = hidden_pad - hidden

    pad_cols = lambda a: jnp.pad(a, ((0, 0), (0, ph)))          # (r, h) -> (r, hp)
    pad_both = lambda a: jnp.pad(a, ((0, ph), (0, ph)))         # (h, h) -> (hp, hp)

    return {
        "w1":     pad_cols(params["w1"]),                        # f32
        "b1":     pad_cols(params["b1"]),
        "w2":     pad_both(params["w2"]).astype(weight_dtype),
        "b2":     pad_cols(params["b2"]),
        "w2_3":   pad_both(params["w2_3"]).astype(weight_dtype),
        "b2_3":   pad_cols(params["b2_3"]),
        "w3_row": pad_cols(params["w3"].T),   # (1, hp) f32, for the VPU reduction
        "b3":     params["b3"],               # (1, 1) f32 scalar -> SMEM
    }


# ----------------------------------------------------------------------------
# pallas_call wrapper
# ----------------------------------------------------------------------------
def value_network_forward(state, kparams, *, batch_tile=None, mish_dtype=None):
    """state: [B, STATE_DIM] f32; kparams: output of prepare_params."""
    batch, state_dim = state.shape
    hp = kparams["w2"].shape[1]

    if mish_dtype is None:
        mish_dtype = _default_mish_dtype()

    if batch_tile is None:
        if batch > 2 * MAX_BATCH_TILE:
            batch_tile = MAX_BATCH_TILE
        else:
            # Split into >= 2 tiles whenever the batch allows it, so both of
            # v7x's TensorCores get work (harmless on single-TC v5e/v6e).
            batch_tile = max(8, min(MAX_BATCH_TILE,
                                    _round_up(pl.cdiv(batch, 2), 8)))
    tb = batch_tile
    grid = (pl.cdiv(batch, tb),)

    # Constant index_map -> block never changes -> fetched once by the
    # Mosaic pipeliner (no per-step weight re-DMA).
    resident = lambda shape: pl.BlockSpec(shape, lambda i: (0, 0))

    nbytes = lambda a: a.size * a.dtype.itemsize
    weight_bytes = sum(nbytes(kparams[k]) for k in
                       ("w1", "b1", "w2", "b2", "w2_3", "b2_3", "w3_row", "b3"))
    cost = pl.CostEstimate(
        flops=2 * batch * (state_dim * hp + 2 * hp * hp + hp),
        transcendentals=2 * 3 * batch * hp,          # exp + recip per mish layer
        bytes_accessed=weight_bytes + batch * (state_dim + 1) * 4,
    )

    kernel = functools.partial(value_network_kernel, mish_dtype=mish_dtype)

    return pl.pallas_call(
        kernel,
        out_shape=jax.ShapeDtypeStruct((batch, 1), jnp.float32),
        grid=grid,
        in_specs=[
            pl.BlockSpec((tb, state_dim), lambda i: (i, 0)),    # batch tile (pipelined)
            resident((state_dim, hp)),                          # w1  (f32, VMEM-resident)
            resident((1, hp)),                                  # b1  (f32)
            resident((hp, hp)),                                 # w2  (bf16)
            resident((1, hp)),                                  # b2
            resident((hp, hp)),                                 # w2_3 (bf16)
            resident((1, hp)),                                  # b2_3
            resident((1, hp)),                                  # w3 row (f32)
            pl.BlockSpec(memory_space=pltpu.MemorySpace.SMEM),  # b3 scalar
        ],
        out_specs=pl.BlockSpec((tb, 1), lambda i: (i, 0)),
        compiler_params=pltpu.CompilerParams(
            # batch tiles are independent -> megacore-shardable on v7x
            dimension_semantics=("parallel",),
            # explicit headroom (v5e's scoped-VMEM default is only ~16 MiB)
            vmem_limit_bytes=32 * 1024 * 1024,
        ),
        cost_estimate=cost,
    )(state,
      kparams["w1"], kparams["b1"],
      kparams["w2"], kparams["b2"],
      kparams["w2_3"], kparams["b2_3"],
      kparams["w3_row"], kparams["b3"])


# ----------------------------------------------------------------------------
# pure-JAX reference (exact PyTorch semantics, f32)
# ----------------------------------------------------------------------------
def _softplus_ref(x):
    return jnp.where(x > 20.0, x, jnp.log1p(jnp.exp(jnp.minimum(x, 20.0))))


def _mish_ref(x):
    return jnp.minimum(x * jnp.tanh(_softplus_ref(x)), 6.0)


def value_network_ref(state, params):
    h = _mish_ref(state @ params["w1"] + params["b1"])
    h = _mish_ref(h @ params["w2"] + params["b2"])
    h = _mish_ref(h @ params["w2_3"] + params["b2_3"])
    return h @ params["w3"] + params["b3"]


if __name__ == "__main__":
    key = jax.random.PRNGKey(0)
    k_param, k_state = jax.random.split(key)

    params = init_params(k_param)
    kparams = prepare_params(params)

    # Tolerances: bf16 512x512 matmuls (+ bf16 mish chain on v6e/v7x) and the
    # approx EUP reciprocal vs an exact-f32 reference.
    ATOL, RTOL = 1e-3, 2e-2

    # 1) small smoke test
    state = jax.random.normal(k_state, (8, STATE_DIM), dtype=jnp.float32)
    out = jax.block_until_ready(value_network_forward(state, kparams))
    ref = value_network_ref(state, params)
    assert out.shape == (8, 1), out.shape
    assert bool(jnp.all(jnp.isfinite(out))), out
    assert jnp.allclose(out, ref, atol=ATOL, rtol=RTOL), (out, ref)

    # 2) non-divisible batch -> partial last tile (garbage padding rows must
    #    be masked on writeback and must not leak into valid rows)
    state2 = jax.random.normal(jax.random.PRNGKey(1), (37, STATE_DIM),
                               dtype=jnp.float32)
    out2 = jax.block_until_ready(value_network_forward(state2, kparams))
    ref2 = value_network_ref(state2, params)
    assert out2.shape == (37, 1), out2.shape
    assert bool(jnp.all(jnp.isfinite(out2))), out2
    assert jnp.allclose(out2, ref2, atol=ATOL, rtol=RTOL), (out2, ref2)

    print("KERNEL_OK")
</pallas_src>

<mosaic_0001>
module attributes {stable_mosaic.version = 11 : i64} {
  func.func @value_network_kernel(%arg0: i32, %arg1: memref<8x16xf32, #tpu.memory_space<vmem>>, %arg2: memref<16x512xf32, #tpu.memory_space<vmem>>, %arg3: memref<1x512xf32, #tpu.memory_space<vmem>>, %arg4: memref<512x512xbf16, #tpu.memory_space<vmem>>, %arg5: memref<1x512xf32, #tpu.memory_space<vmem>>, %arg6: memref<512x512xbf16, #tpu.memory_space<vmem>>, %arg7: memref<1x512xf32, #tpu.memory_space<vmem>>, %arg8: memref<1x512xf32, #tpu.memory_space<vmem>>, %arg9: memref<1x1xf32, #tpu.memory_space<smem>>, %arg10: memref<8x1xf32, #tpu.memory_space<vmem>>) attributes {dimension_semantics = [#tpu.dimension_semantics<parallel>], iteration_bounds = array<i64: 1>, scalar_prefetch = 0 : i64, scratch_operands = 0 : i64, tpu.core_type = #tpu.core_type<tc>, window_params = [{transform_indices = @transform_0, window_bounds = array<i64: 8, 16>}, {pipeline_mode = #tpu.pipeline_mode<synchronous>, transform_indices = @transform_1, window_bounds = array<i64: 16, 512>}, {pipeline_mode = #tpu.pipeline_mode<synchronous>, transform_indices = @transform_2, window_bounds = array<i64: 1, 512>}, {pipeline_mode = #tpu.pipeline_mode<synchronous>, transform_indices = @transform_3, window_bounds = array<i64: 512, 512>}, {pipeline_mode = #tpu.pipeline_mode<synchronous>, transform_indices = @transform_4, window_bounds = array<i64: 1, 512>}, {pipeline_mode = #tpu.pipeline_mode<synchronous>, transform_indices = @transform_5, window_bounds = array<i64: 512, 512>}, {pipeline_mode = #tpu.pipeline_mode<synchronous>, transform_indices = @transform_6, window_bounds = array<i64: 1, 512>}, {pipeline_mode = #tpu.pipeline_mode<synchronous>, transform_indices = @transform_7, window_bounds = array<i64: 1, 512>}, {transform_indices = @transform_8, window_bounds = array<i64: 1, 1>}, {transform_indices = @transform_9, window_bounds = array<i64: 8, 1>}]} {
    %c0 = arith.constant 0 : index
    %c0_0 = arith.constant 0 : index
    %0 = vector.load %arg1[%c0, %c0_0] : memref<8x16xf32, #tpu.memory_space<vmem>>, vector<8x16xf32>
    %c0_1 = arith.constant 0 : index
    %c0_2 = arith.constant 0 : index
    %1 = vector.load %arg2[%c0_1, %c0_2] : memref<16x512xf32, #tpu.memory_space<vmem>>, vector<16x512xf32>
    %cst = arith.constant dense<0.000000e+00> : vector<8x512xf32>
    %2 = tpu.matmul %0, %1, %cst {dimension_numbers = #tpu.dot_dimension_numbers<[1], [0], [0], [1], [0, 0, 1, 1], [], []>} : vector<8x16xf32>, vector<16x512xf32>, vector<8x512xf32> -> vector<8x512xf32>
    %c0_3 = arith.constant 0 : index
    %c0_4 = arith.constant 0 : index
    %3 = vector.load %arg3[%c0_3, %c0_4] : memref<1x512xf32, #tpu.memory_space<vmem>>, vector<1x512xf32>
    %4 = vector.broadcast %3 : vector<1x512xf32> to vector<8x512xf32>
    %5 = arith.addf %2, %4 : vector<8x512xf32>
    %cst_5 = arith.constant 2.000000e+01 : f32
    %6 = vector.broadcast %cst_5 : f32 to vector<8x512xf32>
    %7 = arith.minimumf %5, %6 : vector<8x512xf32>
    %8 = math.exp %7 : vector<8x512xf32>
    %cst_6 = arith.constant 2.000000e+00 : f32
    %9 = vector.broadcast %cst_6 : f32 to vector<8x512xf32>
    %10 = arith.addf %8, %9 : vector<8x512xf32>
    %11 = arith.mulf %8, %10 : vector<8x512xf32>
    %cst_7 = arith.constant 2.000000e+00 : f32
    %12 = vector.broadcast %cst_7 : f32 to vector<8x512xf32>
    %13 = arith.addf %11, %12 : vector<8x512xf32>
    %14 = tpu.reciprocal %13 {approx = true} : vector<8x512xf32> -> vector<8x512xf32>
    %15 = arith.mulf %11, %14 : vector<8x512xf32>
    %16 = arith.mulf %5, %15 : vector<8x512xf32>
    %cst_8 = arith.constant 2.000000e+01 : f32
    %17 = vector.broadcast %cst_8 : f32 to vector<8x512xf32>
    %18 = arith.cmpf ogt, %5, %17 : vector<8x512xf32>
    %19 = arith.select %18, %5, %16 : vector<8x512xi1>, vector<8x512xf32>
    %cst_9 = arith.constant 6.000000e+00 : f32
    %20 = vector.broadcast %cst_9 : f32 to vector<8x512xf32>
    %21 = arith.minimumf %19, %20 : vector<8x512xf32>
    %22 = arith.truncf %21 : vector<8x512xf32> to vector<8x512xbf16>
    %c0_10 = arith.constant 0 : index
    %c0_11 = arith.constant 0 : index
    %23 = vector.load %arg4[%c0_10, %c0_11] : memref<512x512xbf16, #tpu.memory_space<vmem>>, vector<512x512xbf16>
    %cst_12 = arith.constant dense<0.000000e+00> : vector<8x512xf32>
    %24 = tpu.matmul %22, %23, %cst_12 {dimension_numbers = #tpu.dot_dimension_numbers<[1], [0], [0], [1], [0, 0, 1, 1], [], []>} : vector<8x512xbf16>, vector<512x512xbf16>, vector<8x512xf32> -> vector<8x512xf32>
    %c0_13 = arith.constant 0 : index
    %c0_14 = arith.constant 0 : index
    %25 = vector.load %arg5[%c0_13, %c0_14] : memref<1x512xf32, #tpu.memory_space<vmem>>, vector<1x512xf32>
    %26 = vector.broadcast %25 : vector<1x512xf32> to vector<8x512xf32>
    %27 = arith.addf %24, %26 : vector<8x512xf32>
    %cst_15 = arith.constant 2.000000e+01 : f32
    %28 = vector.broadcast %cst_15 : f32 to vector<8x512xf32>
    %29 = arith.minimumf %27, %28 : vector<8x512xf32>
    %30 = math.exp %29 : vector<8x512xf32>
    %cst_16 = arith.constant 2.000000e+00 : f32
    %31 = vector.broadcast %cst_16 : f32 to vector<8x512xf32>
    %32 = arith.addf %30, %31 : vector<8x512xf32>
    %33 = arith.mulf %30, %32 : vector<8x512xf32>
    %cst_17 = arith.constant 2.000000e+00 : f32
    %34 = vector.broadcast %cst_17 : f32 to vector<8x512xf32>
    %35 = arith.addf %33, %34 : vector<8x512xf32>
    %36 = tpu.reciprocal %35 {approx = true} : vector<8x512xf32> -> vector<8x512xf32>
    %37 = arith.mulf %33, %36 : vector<8x512xf32>
    %38 = arith.mulf %27, %37 : vector<8x512xf32>
    %cst_18 = arith.constant 2.000000e+01 : f32
    %39 = vector.broadcast %cst_18 : f32 to vector<8x512xf32>
    %40 = arith.cmpf ogt, %27, %39 : vector<8x512xf32>
    %41 = arith.select %40, %27, %38 : vector<8x512xi1>, vector<8x512xf32>
    %cst_19 = arith.constant 6.000000e+00 : f32
    %42 = vector.broadcast %cst_19 : f32 to vector<8x512xf32>
    %43 = arith.minimumf %41, %42 : vector<8x512xf32>
    %44 = arith.truncf %43 : vector<8x512xf32> to vector<8x512xbf16>
    %c0_20 = arith.constant 0 : index
    %c0_21 = arith.constant 0 : index
    %45 = vector.load %arg6[%c0_20, %c0_21] : memref<512x512xbf16, #tpu.memory_space<vmem>>, vector<512x512xbf16>
    %cst_22 = arith.constant dense<0.000000e+00> : vector<8x512xf32>
    %46 = tpu.matmul %44, %45, %cst_22 {dimension_numbers = #tpu.dot_dimension_numbers<[1], [0], [0], [1], [0, 0, 1, 1], [], []>} : vector<8x512xbf16>, vector<512x512xbf16>, vector<8x512xf32> -> vector<8x512xf32>
    %c0_23 = arith.constant 0 : index
    %c0_24 = arith.constant 0 : index
    %47 = vector.load %arg7[%c0_23, %c0_24] : memref<1x512xf32, #tpu.memory_space<vmem>>, vector<1x512xf32>
    %48 = vector.broadcast %47 : vector<1x512xf32> to vector<8x512xf32>
    %49 = arith.addf %46, %48 : vector<8x512xf32>
    %cst_25 = arith.constant 2.000000e+01 : f32
    %50 = vector.broadcast %cst_25 : f32 to vector<8x512xf32>
    %51 = arith.minimumf %49, %50 : vector<8x512xf32>
    %52 = math.exp %51 : vector<8x512xf32>
    %cst_26 = arith.constant 2.000000e+00 : f32
    %53 = vector.broadcast %cst_26 : f32 to vector<8x512xf32>
    %54 = arith.addf %52, %53 : vector<8x512xf32>
    %55 = arith.mulf %52, %54 : vector<8x512xf32>
    %cst_27 = arith.constant 2.000000e+00 : f32
    %56 = vector.broadcast %cst_27 : f32 to vector<8x512xf32>
    %57 = arith.addf %55, %56 : vector<8x512xf32>
    %58 = tpu.reciprocal %57 {approx = true} : vector<8x512xf32> -> vector<8x512xf32>
    %59 = arith.mulf %55, %58 : vector<8x512xf32>
    %60 = arith.mulf %49, %59 : vector<8x512xf32>
    %cst_28 = arith.constant 2.000000e+01 : f32
    %61 = vector.broadcast %cst_28 : f32 to vector<8x512xf32>
    %62 = arith.cmpf ogt, %49, %61 : vector<8x512xf32>
    %63 = arith.select %62, %49, %60 : vector<8x512xi1>, vector<8x512xf32>
    %cst_29 = arith.constant 6.000000e+00 : f32
    %64 = vector.broadcast %cst_29 : f32 to vector<8x512xf32>
    %65 = arith.minimumf %63, %64 : vector<8x512xf32>
    %c0_30 = arith.constant 0 : index
    %c0_31 = arith.constant 0 : index
    %66 = vector.load %arg8[%c0_30, %c0_31] : memref<1x512xf32, #tpu.memory_space<vmem>>, vector<1x512xf32>
    %67 = vector.broadcast %66 : vector<1x512xf32> to vector<8x512xf32>
    %68 = arith.mulf %65, %67 : vector<8x512xf32>
    %cst_32 = arith.constant dense<0.000000e+00> : vector<8xf32>
    %69 = vector.multi_reduction <add>, %68, %cst_32 [1] : vector<8x512xf32> to vector<8xf32>
    %70 = vector.shape_cast %69 : vector<8xf32> to vector<8x1xf32>
    %c0_33 = arith.constant 0 : index
    %c0_34 = arith.constant 0 : index
    %71 = memref.load %arg9[%c0_33, %c0_34] : memref<1x1xf32, #tpu.memory_space<smem>>
    %72 = vector.broadcast %71 : f32 to vector<8x1xf32>
    %73 = arith.addf %70, %72 : vector<8x1xf32>
    %c0_35 = arith.constant 0 : index
    %c0_36 = arith.constant 0 : index
    %74 = vector.load %arg10[%c0_35, %c0_36] : memref<8x1xf32, #tpu.memory_space<vmem>>, vector<8x1xf32>
    tpu.vector_store %arg10[%c0_35, %c0_36], %73 {strides = array<i32>} : memref<8x1xf32, #tpu.memory_space<vmem>>, vector<8x1xf32>,
    return
  }
  func.func @transform_0(%arg0: i32) -> (i32, i32) {
    %c0_i32 = arith.constant 0 : i32
    %c0_i32_0 = arith.constant 0 : i32
    return %arg0, %c0_i32 : i32, i32
  }
  func.func @transform_1(%arg0: i32) -> (i32, i32) {
    %c0_i32 = arith.constant 0 : i32
    %c0_i32_0 = arith.constant 0 : i32
    %c0_i32_1 = arith.constant 0 : i32
    return %c0_i32, %c0_i32_0 : i32, i32
  }
  func.func @transform_2(%arg0: i32) -> (i32, i32) {
    %c0_i32 = arith.constant 0 : i32
    %c0_i32_0 = arith.constant 0 : i32
    %c0_i32_1 = arith.constant 0 : i32
    return %c0_i32, %c0_i32_0 : i32, i32
  }
  func.func @transform_3(%arg0: i32) -> (i32, i32) {
    %c0_i32 = arith.constant 0 : i32
    %c0_i32_0 = arith.constant 0 : i32
    %c0_i32_1 = arith.constant 0 : i32
    return %c0_i32, %c0_i32_0 : i32, i32
  }
  func.func @transform_4(%arg0: i32) -> (i32, i32) {
    %c0_i32 = arith.constant 0 : i32
    %c0_i32_0 = arith.constant 0 : i32
    %c0_i32_1 = arith.constant 0 : i32
    return %c0_i32, %c0_i32_0 : i32, i32
  }
  func.func @transform_5(%arg0: i32) -> (i32, i32) {
    %c0_i32 = arith.constant 0 : i32
    %c0_i32_0 = arith.constant 0 : i32
    %c0_i32_1 = arith.constant 0 : i32
    return %c0_i32, %c0_i32_0 : i32, i32
  }
  func.func @transform_6(%arg0: i32) -> (i32, i32) {
    %c0_i32 = arith.constant 0 : i32
    %c0_i32_0 = arith.constant 0 : i32
    %c0_i32_1 = arith.constant 0 : i32
    return %c0_i32, %c0_i32_0 : i32, i32
  }
  func.func @transform_7(%arg0: i32) -> (i32, i32) {
    %c0_i32 = arith.constant 0 : i32
    %c0_i32_0 = arith.constant 0 : i32
    %c0_i32_1 = arith.constant 0 : i32
    return %c0_i32, %c0_i32_0 : i32, i32
  }
  func.func @transform_8(%arg0: i32) -> (i32, i32) {
    %c0_i32 = arith.constant 0 : i32
    %c0_i32_0 = arith.constant 0 : i32
    %c0_i32_1 = arith.constant 0 : i32
    return %c0_i32, %c0_i32_0 : i32, i32
  }
  func.func @transform_9(%arg0: i32) -> (i32, i32) {
    %c0_i32 = arith.constant 0 : i32
    %c0_i32_0 = arith.constant 0 : i32
    return %arg0, %c0_i32 : i32, i32
  }
}

</mosaic_0001>

<llo_original>
// kernel: tpu_custom_call.1
$region0: #{tpu_custom_call.1}
  #allocation0 [shape = 'u32[]', space=smem, size = 0x4, offset = 0x4, fixed_abs, tag = 'smem constant byte address 0x4 - core index']
  #allocation1 [shape = 'u32[144,128]{1,0:T(1,128)}', space=vmem, size = 0x12000, scoped, tag = 'internal scratch']
  #allocation2 [shape = 'f32[1,1]{1,0:T(1,128)S(6)}', space=smem, size = 0x200, scoped, tag = 'scoped memory for tpu_custom_call.1']
  %s0 = inlined_call_operand.hbm [shape: f32[8,16], index: 0, kind: input, shape index: {}]
  %s1 = inlined_call_operand.hbm [shape: f32[16,512], index: 1, kind: input, shape index: {}]
  %s2 = inlined_call_operand.vmem [shape: f32[1,512], index: 2, kind: input, shape index: {}]
  %s3 = inlined_call_operand.hbm [shape: bf16[512,512], index: 3, kind: input, shape index: {}]
  %s4 = inlined_call_operand.vmem [shape: f32[1,512], index: 4, kind: input, shape index: {}]
  %s5 = inlined_call_operand.hbm [shape: bf16[512,512], index: 5, kind: input, shape index: {}]
  %s6 = inlined_call_operand.vmem [shape: f32[1,512], index: 6, kind: input, shape index: {}]
  %s7 = inlined_call_operand.hbm [shape: f32[1,512], index: 7, kind: input, shape index: {}]
  %s8 = inlined_call_operand.<no memory space> [shape: f32[1,1], index: 8, kind: input, shape index: {}]
  %s9 = inlined_call_operand.vmem [shape: f32[8,1], index: 9, kind: output, shape index: {}]
  %s10 = sld [smem:[#allocation0]]
  $region66: #{tpu_custom_call.1} parent=0
    _
  %s12 = ssub.s32 1, %s10
  %s13 = scalar_select 0, %s12, %s10
  %14 = sst [smem:[#allocation2]] %s8
  $region1: #{tpu_custom_call.1} parent=0
    #allocation3 [shape = 'u8[4096]{0}', space=vmem, size = 0x1000, scoped, tag = 'input window, operand 0, single buffered']
    #allocation4 [shape = 's32[1]{0}', space=sflag, size = 0x4, scoped, tag = 'scoped memory for tpu_custom_call.1']
    #allocation5 [shape = 'u8[32768]{0}', space=vmem, size = 0x8000, scoped, tag = 'input window, operand 1, single buffered']
    #allocation6 [shape = 's32[1]{0}', space=sflag, size = 0x4, scoped, tag = 'scoped memory for tpu_custom_call.1']
    #allocation7 [shape = 'u8[524288]{0}', space=vmem, size = 0x80000, scoped, tag = 'input window, operand 3, single buffered']
    #allocation8 [shape = 'u8[524288]{0}', space=vmem, size = 0x80000, scoped, tag = 'input window, operand 5, single buffered']
    #allocation9 [shape = 's32[1]{0}', space=sflag, size = 0x4, scoped, tag = 'scoped memory for tpu_custom_call.1']
    #allocation10 [shape = 'u8[2048]{0}', space=vmem, size = 0x800, scoped, tag = 'input window, operand 7, single buffered']
    %15 = vsyncpa [#allocation4], 0
    %16 = vsyncpa [#allocation6], 0
    %17 = vsyncpa [#allocation9], 0
    // Predicated region
    $region2: #{tpu_custom_call.1} parent=1 // pred_check
      _
    $region3: #{tpu_custom_call.1} parent=1 // pred_check_branch
      %19 = sbr.rel (0) target = $region5
    $region4: #{tpu_custom_call.1} parent=1 // pred_region
      %s21 = ssub.s32 128, 128
      %22 = vsyncadd [#allocation4], %s21
      %s24 = sshll.u32 [#allocation3], 4
      %s25 = int_to_ptr.vmem [resolvable:$true] %s24
      %27 = dma.hbm_to_vmem [thread:$0]  %s0, 128, %s25, [#allocation4]
    $region5: #{tpu_custom_call.1} parent=1 // pred_fallthru
      _
    // Predicated region
    $region6: #{tpu_custom_call.1} parent=1 // pred_check
      _
    $region7: #{tpu_custom_call.1} parent=1 // pred_check_branch
      %29 = sbr.rel (0) target = $region9
    $region8: #{tpu_custom_call.1} parent=1 // pred_region
      %s31 = ssub.s32 1024, 1024
      %32 = vsyncadd [#allocation6], %s31
      %s33 = sshll.u32 [#allocation5], 4
      %s34 = int_to_ptr.vmem [resolvable:$true] %s33
      %39 = dma.hbm_to_vmem [thread:$0]  %s1, 1024, %s34, [#allocation6], 512, 512, 32
    $region9: #{tpu_custom_call.1} parent=1 // pred_fallthru
      _
    // Predicated region
    $region10: #{tpu_custom_call.1} parent=1 // pred_check
      _
    $region11: #{tpu_custom_call.1} parent=1 // pred_check_branch
      %41 = sbr.rel (0) target = $region13
    $region12: #{tpu_custom_call.1} parent=1 // pred_region
      _
    $region13: #{tpu_custom_call.1} parent=1 // pred_fallthru
      _
    // Predicated region
    $region14: #{tpu_custom_call.1} parent=1 // pred_check
      _
    $region15: #{tpu_custom_call.1} parent=1 // pred_check_branch
      %43 = sbr.rel (0) target = $region17
    $region16: #{tpu_custom_call.1} parent=1 // pred_region
      %s45 = ssub.s32 16384, 16384
      %46 = vsyncadd [#allocation6], %s45
      %s47 = sshll.u32 [#allocation7], 4
      %s48 = int_to_ptr.vmem [resolvable:$true] %s47
      %53 = dma.hbm_to_vmem [thread:$0]  %s3, 16384, %s48, [#allocation6], 256, 256, 16
    $region17: #{tpu_custom_call.1} parent=1 // pred_fallthru
      _
    // Predicated region
    $region18: #{tpu_custom_call.1} parent=1 // pred_check
      _
    $region19: #{tpu_custom_call.1} parent=1 // pred_check_branch
      %55 = sbr.rel (0) target = $region21
    $region20: #{tpu_custom_call.1} parent=1 // pred_region
      _
    $region21: #{tpu_custom_call.1} parent=1 // pred_fallthru
      _
    // Predicated region
    $region22: #{tpu_custom_call.1} parent=1 // pred_check
      _
    $region23: #{tpu_custom_call.1} parent=1 // pred_check_branch
      %57 = sbr.rel (0) target = $region25
    $region24: #{tpu_custom_call.1} parent=1 // pred_region
      %s59 = ssub.s32 16384, 16384
      %60 = vsyncadd [#allocation9], %s59
      %s61 = sshll.u32 [#allocation8], 4
      %s62 = int_to_ptr.vmem [resolvable:$true] %s61
      %67 = dma.hbm_to_vmem [thread:$0]  %s5, 16384, %s62, [#allocation9], 256, 256, 16
    $region25: #{tpu_custom_call.1} parent=1 // pred_fallthru
      _
    // Predicated region
    $region26: #{tpu_custom_call.1} parent=1 // pred_check
      _
    $region27: #{tpu_custom_call.1} parent=1 // pred_check_branch
      %69 = sbr.rel (0) target = $region29
    $region28: #{tpu_custom_call.1} parent=1 // pred_region
      _
    $region29: #{tpu_custom_call.1} parent=1 // pred_fallthru
      _
    // Predicated region
    $region30: #{tpu_custom_call.1} parent=1 // pred_check
      _
    $region31: #{tpu_custom_call.1} parent=1 // pred_check_branch
      %71 = sbr.rel (0) target = $region33
    $region32: #{tpu_custom_call.1} parent=1 // pred_region
      %s73 = ssub.s32 64, 64
      %74 = vsyncadd [#allocation9], %s73
      %s76 = sshll.u32 [#allocation10], 4
      %s77 = int_to_ptr.vmem [resolvable:$true] %s76
      %79 = dma.hbm_to_vmem [thread:$0]  %s7, 64, %s77, [#allocation9]
    $region33: #{tpu_custom_call.1} parent=1 // pred_fallthru
      _
    // Predicated region
    $region34: #{tpu_custom_call.1} parent=1 // pred_check
      _
    $region35: #{tpu_custom_call.1} parent=1 // pred_check_branch
      %81 = sbr.rel (0) target = $region37
    $region36: #{tpu_custom_call.1} parent=1 // pred_region
      _
    $region37: #{tpu_custom_call.1} parent=1 // pred_fallthru
      _
    // Predicated region
    $region38: #{tpu_custom_call.1} parent=1 // pred_check
      _
    $region39: #{tpu_custom_call.1} parent=1 // pred_check_branch
      %83 = sbr.rel (0) target = $region41
    $region40: #{tpu_custom_call.1} parent=1 // pred_region
      %84 = dma.done [#allocation4], 128
    $region41: #{tpu_custom_call.1} parent=1 // pred_fallthru
      _
    // Predicated region
    $region42: #{tpu_custom_call.1} parent=1 // pred_check
      _
    $region43: #{tpu_custom_call.1} parent=1 // pred_check_branch
      %86 = sbr.rel (0) target = $region45
    $region44: #{tpu_custom_call.1} parent=1 // pred_region
      %87 = dma.done [#allocation6], 1024
    $region45: #{tpu_custom_call.1} parent=1 // pred_fallthru
      _
    // Predicated region
    $region46: #{tpu_custom_call.1} parent=1 // pred_check
      _
    $region47: #{tpu_custom_call.1} parent=1 // pred_check_branch
      %89 = sbr.rel (0) target = $region49
    $region48: #{tpu_custom_call.1} parent=1 // pred_region
      %90 = dma.done [#allocation6], 16384
    $region49: #{tpu_custom_call.1} parent=1 // pred_fallthru
      _
    // Predicated region
    $region50: #{tpu_custom_call.1} parent=1 // pred_check
      _
    $region51: #{tpu_custom_call.1} parent=1 // pred_check_branch
      %92 = sbr.rel (0) target = $region53
    $region52: #{tpu_custom_call.1} parent=1 // pred_region
      %93 = dma.done [#allocation9], 16384
    $region53: #{tpu_custom_call.1} parent=1 // pred_fallthru
      _
    // Predicated region
    $region54: #{tpu_custom_call.1} parent=1 // pred_check
      _
    $region55: #{tpu_custom_call.1} parent=1 // pred_check_branch
      %95 = sbr.rel (0) target = $region57
    $region56: #{tpu_custom_call.1} parent=1 // pred_region
      %96 = dma.done [#allocation9], 64
    $region57: #{tpu_custom_call.1} parent=1 // pred_fallthru
      _
    %v97 = vld [vmem:[#allocation3] sm:$0xff]
    %v98 = vld [vmem:[#allocation5] sm:$0xff]
    %v99 = vld [vmem:[#allocation5 + $0x8] sm:$0xff]
    %v100 = vld [vmem:[#allocation5 + $0x10] sm:$0xff]
    %v101 = vld [vmem:[#allocation5 + $0x18] sm:$0xff]
    %v102 = vld [vmem:[#allocation5 + $0x20] sm:$0xff]
    %v103 = vld [vmem:[#allocation5 + $0x28] sm:$0xff]
    %v104 = vld [vmem:[#allocation5 + $0x30] sm:$0xff]
    %v105 = vld [vmem:[#allocation5 + $0x38] sm:$0xff]
    %v106 = vld [vmem:[%s2] sm:$0xf]
    %v108 = vlaneseq
    %v109 = vshrl.u32 %v108, 7
    %v110 = vsub.s32 0, %v109
    %v111 = vrot.slane %v106, %v110
    %v112 = vlaneseq
    %v113 = vshrl.u32 %v112, 7
    %v114 = vsub.s32 1, %v113
    %v115 = vrot.slane %v106, %v114
    %v116 = vlaneseq
    %v117 = vshrl.u32 %v116, 7
    %v118 = vsub.s32 2, %v117
    %v119 = vrot.slane %v106, %v118
    %v120 = vlaneseq
    %v121 = vshrl.u32 %v120, 7
    %v122 = vsub.s32 3, %v121
    %v123 = vrot.slane %v106, %v122
    %vm128 = vcmask 130048
    %v130 = vsel %vm128, %v97, 0
    %132 = vmatprep.subr.mxu0 0.0
    %133 = vmatpush1.msra.mxu0 0.0
    %134 = vmatprep.subr.mxu0 0.0
    %135 = vmatpush1.msra.mxu0 0.0
    %136 = vmatprep.subr.mxu0 0.0
    %137 = vmatpush1.msra.mxu0 0.0
    %138 = vmatprep.subr.mxu0 0.0
    %139 = vmatpush1.msra.mxu0 0.0
    %140 = vmatprep.subr.mxu0 0.0
    %141 = vmatpush1.msra.mxu0 0.0
    %142 = vmatprep.subr.mxu0 0.0
    %143 = vmatpush1.msra.mxu0 0.0
    %144 = vmatprep.subr.mxu0 0.0
    %145 = vmatpush1.msra.mxu0 0.0
    %146 = vmatprep.subr.mxu0 0.0
    %147 = vmatpush1.msra.mxu0 0.0
    %148 = vmatprep.subr.mxu0 0.0
    %149 = vmatpush1.msra.mxu0 0.0
    %150 = vmatprep.subr.mxu0 0.0
    %151 = vmatpush1.msra.mxu0 0.0
    %152 = vmatprep.subr.mxu0 0.0
    %153 = vmatpush1.msra.mxu0 0.0
    %154 = vmatprep.subr.mxu0 0.0
    %155 = vmatpush1.msra.mxu0 0.0
    %156 = vmatprep.subr.mxu0 0.0
    %157 = vmatpush1.msra.mxu0 0.0
    %158 = vmatprep.subr.mxu0 0.0
    %159 = vmatpush1.msra.mxu0 0.0
    %160 = vmatprep.subr.mxu0 %v103
    %161 = vmatpush1.msra.mxu0 %v102
    %162 = vmatprep.subr.mxu0 %v99
    %163 = vmatpush1.msra.mxu0 %v98
    %164 = vmatprep.subr.mxu0 0.0
    %165 = vmatpush2.msra.mxu0 0.0
    %166 = vmatprep.subr.mxu0 0.0
    %167 = vmatpush2.msra.mxu0 0.0
    %168 = vmatprep.subr.mxu0 0.0
    %169 = vmatpush2.msra.mxu0 0.0
    %170 = vmatprep.subr.mxu0 0.0
    %171 = vmatpush2.msra.mxu0 0.0
    %172 = vmatprep.subr.mxu0 0.0
    %173 = vmatpush2.msra.mxu0 0.0
    %174 = vmatprep.subr.mxu0 0.0
    %175 = vmatpush2.msra.mxu0 0.0
    %176 = vmatprep.subr.mxu0 0.0
    %177 = vmatpush2.msra.mxu0 0.0
    %178 = vmatprep.subr.mxu0 0.0
    %179 = vmatpush2.msra.mxu0 0.0
    %180 = vmatprep.subr.mxu0 0.0
    %181 = vmatpush2.msra.mxu0 0.0
    %182 = vmatprep.subr.mxu0 0.0
    %183 = vmatpush2.msra.mxu0 0.0
    %184 = vmatprep.subr.mxu0 0.0
    %185 = vmatpush2.msra.mxu0 0.0
    %186 = vmatprep.subr.mxu0 0.0
    %187 = vmatpush2.msra.mxu0 0.0
    %188 = vmatprep.subr.mxu0 0.0
    %189 = vmatpush2.msra.mxu0 0.0
    %190 = vmatprep.subr.mxu0 0.0
    %191 = vmatpush2.msra.mxu0 0.0
    %192 = vmatprep.subr.mxu0 0.0
    %193 = vmatpush2.msra.mxu0 0.0
    %194 = vmatprep.subr.mxu0 0.0
    %195 = vmatpush2.msra.mxu0 0.0
    %196 = vmatprep.mubr.f32.mxu0 0.0
    %197 = vmatmul.mubr.f32.gmra.mxu0 %v130
    %v198 = vpop.f32.mrf.mxu0
    %v199 = vadd.f32 %v111, %v198
    %v200 = vpop.f32.mrf.mxu0
    %v201 = vadd.f32 %v115, %v200
    %202 = vdwg.mxu0
    %203 = vmatprep.subr.mxu0 0.0
    %204 = vmatpush1.msra.mxu0 0.0
    %205 = vmatprep.subr.mxu0 0.0
    %206 = vmatpush1.msra.mxu0 0.0
    %207 = vmatprep.subr.mxu0 0.0
    %208 = vmatpush1.msra.mxu0 0.0
    %209 = vmatprep.subr.mxu0 0.0
    %210 = vmatpush1.msra.mxu0 0.0
    %211 = vmatprep.subr.mxu0 0.0
    %212 = vmatpush1.msra.mxu0 0.0
    %213 = vmatprep.subr.mxu0 0.0
    %214 = vmatpush1.msra.mxu0 0.0
    %215 = vmatprep.subr.mxu0 0.0
    %216 = vmatpush1.msra.mxu0 0.0
    %217 = vmatprep.subr.mxu0 0.0
    %218 = vmatpush1.msra.mxu0 0.0
    %219 = vmatprep.subr.mxu0 0.0
    %220 = vmatpush1.msra.mxu0 0.0
    %221 = vmatprep.subr.mxu0 0.0
    %222 = vmatpush1.msra.mxu0 0.0
    %223 = vmatprep.subr.mxu0 0.0
    %224 = vmatpush1.msra.mxu0 0.0
    %225 = vmatprep.subr.mxu0 0.0
    %226 = vmatpush1.msra.mxu0 0.0
    %227 = vmatprep.subr.mxu0 0.0
    %228 = vmatpush1.msra.mxu0 0.0
    %229 = vmatprep.subr.mxu0 0.0
    %230 = vmatpush1.msra.mxu0 0.0
    %231 = vmatprep.subr.mxu0 %v105
    %232 = vmatpush1.msra.mxu0 %v104
    %233 = vmatprep.subr.mxu0 %v101
    %234 = vmatpush1.msra.mxu0 %v100
    %235 = vmatprep.subr.mxu0 0.0
    %236 = vmatpush2.msra.mxu0 0.0
    %237 = vmatprep.subr.mxu0 0.0
    %238 = vmatpush2.msra.mxu0 0.0
    %239 = vmatprep.subr.mxu0 0.0
    %240 = vmatpush2.msra.mxu0 0.0
    %241 = vmatprep.subr.mxu0 0.0
    %242 = vmatpush2.msra.mxu0 0.0
    %243 = vmatprep.subr.mxu0 0.0
    %244 = vmatpush2.msra.mxu0 0.0
    %245 = vmatprep.subr.mxu0 0.0
    %246 = vmatpush2.msra.mxu0 0.0
    %247 = vmatprep.subr.mxu0 0.0
    %248 = vmatpush2.msra.mxu0 0.0
    %249 = vmatprep.subr.mxu0 0.0
    %250 = vmatpush2.msra.mxu0 0.0
    %251 = vmatprep.subr.mxu0 0.0
    %252 = vmatpush2.msra.mxu0 0.0
    %253 = vmatprep.subr.mxu0 0.0
    %254 = vmatpush2.msra.mxu0 0.0
    %255 = vmatprep.subr.mxu0 0.0
    %256 = vmatpush2.msra.mxu0 0.0
    %257 = vmatprep.subr.mxu0 0.0
    %258 = vmatpush2.msra.mxu0 0.0
    %259 = vmatprep.subr.mxu0 0.0
    %260 = vmatpush2.msra.mxu0 0.0
    %261 = vmatprep.subr.mxu0 0.0
    %262 = vmatpush2.msra.mxu0 0.0
    %263 = vmatprep.subr.mxu0 0.0
    %264 = vmatpush2.msra.mxu0 0.0
    %265 = vmatprep.subr.mxu0 0.0
    %266 = vmatpush2.msra.mxu0 0.0
    %267 = vmatprep.mubr.f32.mxu0 0.0
    %268 = vmatmul.mubr.f32.gmra.mxu0 %v130
    %v269 = vpop.f32.mrf.mxu0
    %v270 = vadd.f32 %v119, %v269
    %v271 = vpop.f32.mrf.mxu0
    %v272 = vadd.f32 %v123, %v271
    %273 = vdwg.mxu0
    %v274 = vmin.f32 %v199, 20.0
    %v275 = vmin.f32 %v201, 20.0
    %v276 = vmin.f32 %v270, 20.0
    %v277 = vmin.f32 %v272, 20.0
    %v278 = vmul.f32 %v274, 1.442695
    %v279 = vpow.pop %v278
    %v280 = vmul.f32 %v275, 1.442695
    %v281 = vpow.pop %v280
    %v282 = vmul.f32 %v276, 1.442695
    %v283 = vpow.pop %v282
    %v284 = vmul.f32 %v277, 1.442695
    %v285 = vpow.pop %v284
    %v286 = vadd.f32 %v279, 2.0
    %v287 = vadd.f32 %v281, 2.0
    %v288 = vadd.f32 %v283, 2.0
    %v289 = vadd.f32 %v285, 2.0
    %v290 = vmul.f32 %v279, %v286
    %v291 = vmul.f32 %v281, %v287
    %v292 = vmul.f32 %v283, %v288
    %v293 = vmul.f32 %v285, %v289
    %v294 = vadd.f32 %v290, 2.0
    %v295 = vadd.f32 %v291, 2.0
    %v296 = vadd.f32 %v292, 2.0
    %v297 = vadd.f32 %v293, 2.0
    %v298 = vrcp.pop %v294
    %v299 = vrcp.pop %v295
    %v300 = vrcp.pop %v296
    %v301 = vrcp.pop %v297
    %v302 = vmul.f32 %v290, %v298
    %v303 = vmul.f32 %v291, %v299
    %v304 = vmul.f32 %v292, %v300
    %v305 = vmul.f32 %v293, %v301
    %v306 = vmul.f32 %v199, %v302
    %v307 = vmul.f32 %v201, %v303
    %v308 = vmul.f32 %v270, %v304
    %v309 = vmul.f32 %v272, %v305
    %vm310 = vcmp.gt.f32.partialorder %v199, 20.0
    %vm311 = vcmp.gt.f32.partialorder %v201, 20.0
    %vm312 = vcmp.gt.f32.partialorder %v270, 20.0
    %vm313 = vcmp.gt.f32.partialorder %v272, 20.0
    %v314 = vsel %vm310, %v199, %v306
    %v315 = vsel %vm311, %v201, %v307
    %v316 = vsel %vm312, %v270, %v308
    %v317 = vsel %vm313, %v272, %v309
    %v318 = vmin.f32 %v314, 6.0
    %v319 = vmin.f32 %v315, 6.0
    %v320 = vmin.f32 %v316, 6.0
    %v321 = vmin.f32 %v317, 6.0
    %v322 = vpack.c.bf16 %v318, %v318
    %v323 = vpack.c.bf16 %v319, %v319
    %v324 = vpack.c.bf16 %v320, %v320
    %v325 = vpack.c.bf16 %v321, %v321
    %v326 = vld [vmem:[#allocation7] sm:$0xff]
    %v327 = vld [vmem:[#allocation7 + $0x8] sm:$0xff]
    %v328 = vld [vmem:[#allocation7 + $0x10] sm:$0xff]
    %v329 = vld [vmem:[#allocation7 + $0x18] sm:$0xff]
    %v330 = vld [vmem:[#allocation7 + $0x20] sm:$0xff]
    %v331 = vld [vmem:[#allocation7 + $0x28] sm:$0xff]
    %v332 = vld [vmem:[#allocation7 + $0x30] sm:$0xff]
    %v333 = vld [vmem:[#allocation7 + $0x38] sm:$0xff]
    %v334 = vld [vmem:[#allocation7 + $0x40] sm:$0xff]
    %v335 = vld [vmem:[#allocation7 + $0x48] sm:$0xff]
    %v336 = vld [vmem:[#allocation7 + $0x50] sm:$0xff]
    %v337 = vld [vmem:[#allocation7 + $0x58] sm:$0xff]
    %v338 = vld [vmem:[#allocation7 + $0x60] sm:$0xff]
    %v339 = vld [vmem:[#allocation7 + $0x68] sm:$0xff]
    %v340 = vld [vmem:[#allocation7 + $0x70] sm:$0xff]
    %v341 = vld [vmem:[#allocation7 + $0x78] sm:$0xff]
    %v342 = vld [vmem:[#allocation7 + $0x80] sm:$0xff]
    %v343 = vld [vmem:[#allocation7 + $0x88] sm:$0xff]
    %v344 = vld [vmem:[#allocation7 + $0x90] sm:$0xff]
    %v345 = vld [vmem:[#allocation7 + $0x98] sm:$0xff]
    %v346 = vld [vmem:[#allocation7 + $0xa0] sm:$0xff]
    %v347 = vld [vmem:[#allocation7 + $0xa8] sm:$0xff]
    %v348 = vld [vmem:[#allocation7 + $0xb0] sm:$0xff]
    %v349 = vld [vmem:[#allocation7 + $0xb8] sm:$0xff]
    %v350 = vld [vmem:[#allocation7 + $0xc0] sm:$0xff]
    %v351 = vld [vmem:[#allocation7 + $0xc8] sm:$0xff]
    %v352 = vld [vmem:[#allocation7 + $0xd0] sm:$0xff]
    %v353 = vld [vmem:[#allocation7 + $0xd8] sm:$0xff]
    %v354 = vld [vmem:[#allocation7 + $0xe0] sm:$0xff]
    %v355 = vld [vmem:[#allocation7 + $0xe8] sm:$0xff]
    %v356 = vld [vmem:[#allocation7 + $0xf0] sm:$0xff]
    %v357 = vld [vmem:[#allocation7 + $0xf8] sm:$0xff]
    %v358 = vld [vmem:[#allocation7 + $0x100] sm:$0xff]
    %v359 = vld [vmem:[#allocation7 + $0x108] sm:$0xff]
    %v360 = vld [vmem:[#allocation7 + $0x110] sm:$0xff]
    %v361 = vld [vmem:[#allocation7 + $0x118] sm:$0xff]
    %v362 = vld [vmem:[#allocation7 + $0x120] sm:$0xff]
    %v363 = vld [vmem:[#allocation7 + $0x128] sm:$0xff]
    %v364 = vld [vmem:[#allocation7 + $0x130] sm:$0xff]
    %v365 = vld [vmem:[#allocation7 + $0x138] sm:$0xff]
    %v366 = vld [vmem:[#allocation7 + $0x140] sm:$0xff]
    %v367 = vld [vmem:[#allocation7 + $0x148] sm:$0xff]
    %v368 = vld [vmem:[#allocation7 + $0x150] sm:$0xff]
    %v369 = vld [vmem:[#allocation7 + $0x158] sm:$0xff]
    %v370 = vld [vmem:[#allocation7 + $0x160] sm:$0xff]
    %v371 = vld [vmem:[#allocation7 + $0x168] sm:$0xff]
    %v372 = vld [vmem:[#allocation7 + $0x170] sm:$0xff]
    %v373 = vld [vmem:[#allocation7 + $0x178] sm:$0xff]
    %v374 = vld [vmem:[#allocation7 + $0x180] sm:$0xff]
    %v375 = vld [vmem:[#allocation7 + $0x188] sm:$0xff]
    %v376 = vld [vmem:[#allocation7 + $0x190] sm:$0xff]
    %v377 = vld [vmem:[#allocation7 + $0x198] sm:$0xff]
    %v378 = vld [vmem:[#allocation7 + $0x1a0] sm:$0xff]
    %v379 = vld [vmem:[#allocation7 + $0x1a8] sm:$0xff]
    %v380 = vld [vmem:[#allocation7 + $0x1b0] sm:$0xff]
    %v381 = vld [vmem:[#allocation7 + $0x1b8] sm:$0xff]
    %v382 = vld [vmem:[#allocation7 + $0x1c0] sm:$0xff]
    %v383 = vld [vmem:[#allocation7 + $0x1c8] sm:$0xff]
    %v384 = vld [vmem:[#allocation7 + $0x1d0] sm:$0xff]
    %v385 = vld [vmem:[#allocation7 + $0x1d8] sm:$0xff]
    %v386 = vld [vmem:[#allocation7 + $0x1e0] sm:$0xff]
    %v387 = vld [vmem:[#allocation7 + $0x1e8] sm:$0xff]
    %v388 = vld [vmem:[#allocation7 + $0x1f0] sm:$0xff]
    %v389 = vld [vmem:[#allocation7 + $0x1f8] sm:$0xff]
    %v390 = vld [vmem:[#allocation7 + $0x200] sm:$0xff]
    %v391 = vld [vmem:[#allocation7 + $0x208] sm:$0xff]
    %v392 = vld [vmem:[#allocation7 + $0x210] sm:$0xff]
    %v393 = vld [vmem:[#allocation7 + $0x218] sm:$0xff]
    %v394 = vld [vmem:[#allocation7 + $0x220] sm:$0xff]
    %v395 = vld [vmem:[#allocation7 + $0x228] sm:$0xff]
    %v396 = vld [vmem:[#allocation7 + $0x230] sm:$0xff]
    %v397 = vld [vmem:[#allocation7 + $0x238] sm:$0xff]
    %v398 = vld [vmem:[#allocation7 + $0x240] sm:$0xff]
    %v399 = vld [vmem:[#allocation7 + $0x248] sm:$0xff]
    %v400 = vld [vmem:[#allocation7 + $0x250] sm:$0xff]
    %v401 = vld [vmem:[#allocation7 + $0x258] sm:$0xff]
    %v402 = vld [vmem:[#allocation7 + $0x260] sm:$0xff]
    %v403 = vld [vmem:[#allocation7 + $0x268] sm:$0xff]
    %v404 = vld [vmem:[#allocation7 + $0x270] sm:$0xff]
    %v405 = vld [vmem:[#allocation7 + $0x278] sm:$0xff]
    %v406 = vld [vmem:[#allocation7 + $0x280] sm:$0xff]
    %v407 = vld [vmem:[#allocation7 + $0x288] sm:$0xff]
    %v408 = vld [vmem:[#allocation7 + $0x290] sm:$0xff]
    %v409 = vld [vmem:[#allocation7 + $0x298] sm:$0xff]
    %v410 = vld [vmem:[#allocation7 + $0x2a0] sm:$0xff]
    %v411 = vld [vmem:[#allocation7 + $0x2a8] sm:$0xff]
    %v412 = vld [vmem:[#allocation7 + $0x2b0] sm:$0xff]
    %v413 = vld [vmem:[#allocation7 + $0x2b8] sm:$0xff]
    %v414 = vld [vmem:[#allocation7 + $0x2c0] sm:$0xff]
    %v415 = vld [vmem:[#allocation7 + $0x2c8] sm:$0xff]
    %v416 = vld [vmem:[#allocation7 + $0x2d0] sm:$0xff]
    %v417 = vld [vmem:[#allocation7 + $0x2d8] sm:$0xff]
    %v418 = vld [vmem:[#allocation7 + $0x2e0] sm:$0xff]
    %v419 = vld [vmem:[#allocation7 + $0x2e8] sm:$0xff]
    %v420 = vld [vmem:[#allocation7 + $0x2f0] sm:$0xff]
    %v421 = vld [vmem:[#allocation7 + $0x2f8] sm:$0xff]
    %v422 = vld [vmem:[#allocation7 + $0x300] sm:$0xff]
    %v423 = vld [vmem:[#allocation7 + $0x308] sm:$0xff]
    %v424 = vld [vmem:[#allocation7 + $0x310] sm:$0xff]
    %v425 = vld [vmem:[#allocation7 + $0x318] sm:$0xff]
    %v426 = vld [vmem:[#allocation7 + $0x320] sm:$0xff]
    %v427 = vld [vmem:[#allocation7 + $0x328] sm:$0xff]
    %v428 = vld [vmem:[#allocation7 + $0x330] sm:$0xff]
    %v429 = vld [vmem:[#allocation7 + $0x338] sm:$0xff]
    %v430 = vld [vmem:[#allocation7 + $0x340] sm:$0xff]
    %v431 = vld [vmem:[#allocation7 + $0x348] sm:$0xff]
    %v432 = vld [vmem:[#allocation7 + $0x350] sm:$0xff]
    %v433 = vld [vmem:[#allocation7 + $0x358] sm:$0xff]
    %v434 = vld [vmem:[#allocation7 + $0x360] sm:$0xff]
    %v435 = vld [vmem:[#allocation7 + $0x368] sm:$0xff]
    %v436 = vld [vmem:[#allocation7 + $0x370] sm:$0xff]
    %v437 = vld [vmem:[#allocation7 + $0x378] sm:$0xff]
    %v438 = vld [vmem:[#allocation7 + $0x380] sm:$0xff]
    %v439 = vld [vmem:[#allocation7 + $0x388] sm:$0xff]
    %v440 = vld [vmem:[#allocation7 + $0x390] sm:$0xff]
    %v441 = vld [vmem:[#allocation7 + $0x398] sm:$0xff]
    %v442 = vld [vmem:[#allocation7 + $0x3a0] sm:$0xff]
    %v443 = vld [vmem:[#allocation7 + $0x3a8] sm:$0xff]
    %v444 = vld [vmem:[#allocation7 + $0x3b0] sm:$0xff]
    %v445 = vld [vmem:[#allocation7 + $0x3b8] sm:$0xff]
    %v446 = vld [vmem:[#allocation7 + $0x3c0] sm:$0xff]
    %v447 = vld [vmem:[#allocation7 + $0x3c8] sm:$0xff]
    %v448 = vld [vmem:[#allocation7 + $0x3d0] sm:$0xff]
    %v449 = vld [vmem:[#allocation7 + $0x3d8] sm:$0xff]
    %v450 = vld [vmem:[#allocation7 + $0x3e0] sm:$0xff]
    %v451 = vld [vmem:[#allocation7 + $0x3e8] sm:$0xff]
    %v452 = vld [vmem:[#allocation7 + $0x3f0] sm:$0xff]
    %v453 = vld [vmem:[#allocation7 + $0x3f8] sm:$0xff]
    %v454 = vld [vmem:[%s4] sm:$0xf]
    %v456 = vlaneseq
    %v457 = vshrl.u32 %v456, 7
    %v458 = vsub.s32 0, %v457
    %v459 = vrot.slane %v454, %v458
    %v460 = vlaneseq
    %v461 = vshrl.u32 %v460, 7
    %v462 = vsub.s32 1, %v461
    %v463 = vrot.slane %v454, %v462
    %v464 = vlaneseq
    %v465 = vshrl.u32 %v464, 7
    %v466 = vsub.s32 2, %v465
    %v467 = vrot.slane %v454, %v466
    %v468 = vlaneseq
    %v469 = vshrl.u32 %v468, 7
    %v470 = vsub.s32 3, %v469
    %v471 = vrot.slane %v454, %v470
    %v604 = vunpack.c.l.b16 %v326
    %v605 = vunpack.c.h.b16 %v326
    %v606 = vunpack.c.l.b16 %v327
    %v607 = vunpack.c.h.b16 %v327
    %v608 = vunpack.c.l.b16 %v328
    %v609 = vunpack.c.h.b16 %v328
    %v610 = vunpack.c.l.b16 %v329
    %v611 = vunpack.c.h.b16 %v329
    %v612 = vunpack.c.l.b16 %v330
    %v613 = vunpack.c.h.b16 %v330
    %v614 = vunpack.c.l.b16 %v331
    %v615 = vunpack.c.h.b16 %v331
    %v616 = vunpack.c.l.b16 %v332
    %v617 = vunpack.c.h.b16 %v332
    %v618 = vunpack.c.l.b16 %v333
    %v619 = vunpack.c.h.b16 %v333
    %v620 = vunpack.c.l.b16 %v334
    %v621 = vunpack.c.h.b16 %v334
    %v622 = vunpack.c.l.b16 %v335
    %v623 = vunpack.c.h.b16 %v335
    %v624 = vunpack.c.l.b16 %v336
    %v625 = vunpack.c.h.b16 %v336
    %v626 = vunpack.c.l.b16 %v337
    %v627 = vunpack.c.h.b16 %v337
    %v628 = vunpack.c.l.b16 %v338
    %v629 = vunpack.c.h.b16 %v338
    %v630 = vunpack.c.l.b16 %v339
    %v631 = vunpack.c.h.b16 %v339
    %v632 = vunpack.c.l.b16 %v340
    %v633 = vunpack.c.h.b16 %v340
    %v634 = vunpack.c.l.b16 %v341
    %v635 = vunpack.c.h.b16 %v341
    %v636 = vunpack.c.l.b16 %v342
    %v637 = vunpack.c.h.b16 %v342
    %v638 = vunpack.c.l.b16 %v343
    %v639 = vunpack.c.h.b16 %v343
    %v640 = vunpack.c.l.b16 %v344
    %v641 = vunpack.c.h.b16 %v344
    %v642 = vunpack.c.l.b16 %v345
    %v643 = vunpack.c.h.b16 %v345
    %v644 = vunpack.c.l.b16 %v346
    %v645 = vunpack.c.h.b16 %v346
    %v646 = vunpack.c.l.b16 %v347
    %v647 = vunpack.c.h.b16 %v347
    %v648 = vunpack.c.l.b16 %v348
    %v649 = vunpack.c.h.b16 %v348
    %v650 = vunpack.c.l.b16 %v349
    %v651 = vunpack.c.h.b16 %v349
    %v652 = vunpack.c.l.b16 %v350
    %v653 = vunpack.c.h.b16 %v350
    %v654 = vunpack.c.l.b16 %v351
    %v655 = vunpack.c.h.b16 %v351
    %v656 = vunpack.c.l.b16 %v352
    %v657 = vunpack.c.h.b16 %v352
    %v658 = vunpack.c.l.b16 %v353
    %v659 = vunpack.c.h.b16 %v353
    %v660 = vunpack.c.l.b16 %v354
    %v661 = vunpack.c.h.b16 %v354
    %v662 = vunpack.c.l.b16 %v355
    %v663 = vunpack.c.h.b16 %v355
    %v664 = vunpack.c.l.b16 %v356
    %v665 = vunpack.c.h.b16 %v356
    %v666 = vunpack.c.l.b16 %v357
    %v667 = vunpack.c.h.b16 %v357
    %v668 = vunpack.c.l.b16 %v358
    %v669 = vunpack.c.h.b16 %v358
    %v670 = vunpack.c.l.b16 %v359
    %v671 = vunpack.c.h.b16 %v359
    %v672 = vunpack.c.l.b16 %v360
    %v673 = vunpack.c.h.b16 %v360
    %v674 = vunpack.c.l.b16 %v361
    %v675 = vunpack.c.h.b16 %v361
    %v676 = vunpack.c.l.b16 %v362
    %v677 = vunpack.c.h.b16 %v362
    %v678 = vunpack.c.l.b16 %v363
    %v679 = vunpack.c.h.b16 %v363
    %v680 = vunpack.c.l.b16 %v364
    %v681 = vunpack.c.h.b16 %v364
    %v682 = vunpack.c.l.b16 %v365
    %v683 = vunpack.c.h.b16 %v365
    %v684 = vunpack.c.l.b16 %v366
    %v685 = vunpack.c.h.b16 %v366
    %v686 = vunpack.c.l.b16 %v367
    %v687 = vunpack.c.h.b16 %v367
    %v688 = vunpack.c.l.b16 %v368
    %v689 = vunpack.c.h.b16 %v368
    %v690 = vunpack.c.l.b16 %v369
    %v691 = vunpack.c.h.b16 %v369
    %v692 = vunpack.c.l.b16 %v370
    %v693 = vunpack.c.h.b16 %v370
    %v694 = vunpack.c.l.b16 %v371
    %v695 = vunpack.c.h.b16 %v371
    %v696 = vunpack.c.l.b16 %v372
    %v697 = vunpack.c.h.b16 %v372
    %v698 = vunpack.c.l.b16 %v373
    %v699 = vunpack.c.h.b16 %v373
    %v700 = vunpack.c.l.b16 %v374
    %v701 = vunpack.c.h.b16 %v374
    %v702 = vunpack.c.l.b16 %v375
    %v703 = vunpack.c.h.b16 %v375
    %v704 = vunpack.c.l.b16 %v376
    %v705 = vunpack.c.h.b16 %v376
    %v706 = vunpack.c.l.b16 %v377
    %v707 = vunpack.c.h.b16 %v377
    %v708 = vunpack.c.l.b16 %v378
    %v709 = vunpack.c.h.b16 %v378
    %v710 = vunpack.c.l.b16 %v379
    %v711 = vunpack.c.h.b16 %v379
    %v712 = vunpack.c.l.b16 %v380
    %v713 = vunpack.c.h.b16 %v380
    %v714 = vunpack.c.l.b16 %v381
    %v715 = vunpack.c.h.b16 %v381
    %v716 = vunpack.c.l.b16 %v382
    %v717 = vunpack.c.h.b16 %v382
    %v718 = vunpack.c.l.b16 %v383
    %v719 = vunpack.c.h.b16 %v383
    %v720 = vunpack.c.l.b16 %v384
    %v721 = vunpack.c.h.b16 %v384
    %v722 = vunpack.c.l.b16 %v385
    %v723 = vunpack.c.h.b16 %v385
    %v724 = vunpack.c.l.b16 %v386
    %v725 = vunpack.c.h.b16 %v386
    %v726 = vunpack.c.l.b16 %v387
    %v727 = vunpack.c.h.b16 %v387
    %v728 = vunpack.c.l.b16 %v388
    %v729 = vunpack.c.h.b16 %v388
    %v730 = vunpack.c.l.b16 %v389
    %v731 = vunpack.c.h.b16 %v389
    %v732 = vunpack.c.l.b16 %v390
    %v733 = vunpack.c.h.b16 %v390
    %v734 = vunpack.c.l.b16 %v391
    %v735 = vunpack.c.h.b16 %v391
    %v736 = vunpack.c.l.b16 %v392
    %v737 = vunpack.c.h.b16 %v392
    %v738 = vunpack.c.l.b16 %v393
    %v739 = vunpack.c.h.b16 %v393
    %v740 = vunpack.c.l.b16 %v394
    %v741 = vunpack.c.h.b16 %v394
    %v742 = vunpack.c.l.b16 %v395
    %v743 = vunpack.c.h.b16 %v395
    %v744 = vunpack.c.l.b16 %v396
    %v745 = vunpack.c.h.b16 %v396
    %v746 = vunpack.c.l.b16 %v397
    %v747 = vunpack.c.h.b16 %v397
    %v748 = vunpack.c.l.b16 %v398
    %v749 = vunpack.c.h.b16 %v398
    %v750 = vunpack.c.l.b16 %v399
    %v751 = vunpack.c.h.b16 %v399
    %v752 = vunpack.c.l.b16 %v400
    %v753 = vunpack.c.h.b16 %v400
    %v754 = vunpack.c.l.b16 %v401
    %v755 = vunpack.c.h.b16 %v401
    %v756 = vunpack.c.l.b16 %v402
    %v757 = vunpack.c.h.b16 %v402
    %v758 = vunpack.c.l.b16 %v403
    %v759 = vunpack.c.h.b16 %v403
    %v760 = vunpack.c.l.b16 %v404
    %v761 = vunpack.c.h.b16 %v404
    %v762 = vunpack.c.l.b16 %v405
    %v763 = vunpack.c.h.b16 %v405
    %v764 = vunpack.c.l.b16 %v406
    %v765 = vunpack.c.h.b16 %v406
    %v766 = vunpack.c.l.b16 %v407
    %v767 = vunpack.c.h.b16 %v407
    %v768 = vunpack.c.l.b16 %v408
    %v769 = vunpack.c.h.b16 %v408
    %v770 = vunpack.c.l.b16 %v409
    %v771 = vunpack.c.h.b16 %v409
    %v772 = vunpack.c.l.b16 %v410
    %v773 = vunpack.c.h.b16 %v410
    %v774 = vunpack.c.l.b16 %v411
    %v775 = vunpack.c.h.b16 %v411
    %v776 = vunpack.c.l.b16 %v412
    %v777 = vunpack.c.h.b16 %v412
    %v778 = vunpack.c.l.b16 %v413
    %v779 = vunpack.c.h.b16 %v413
    %v780 = vunpack.c.l.b16 %v414
    %v781 = vunpack.c.h.b16 %v414
    %v782 = vunpack.c.l.b16 %v415
    %v783 = vunpack.c.h.b16 %v415
    %v784 = vunpack.c.l.b16 %v416
    %v785 = vunpack.c.h.b16 %v416
    %v786 = vunpack.c.l.b16 %v417
    %v787 = vunpack.c.h.b16 %v417
    %v788 = vunpack.c.l.b16 %v418
    %v789 = vunpack.c.h.b16 %v418
    %v790 = vunpack.c.l.b16 %v419
    %v791 = vunpack.c.h.b16 %v419
    %v792 = vunpack.c.l.b16 %v420
    %v793 = vunpack.c.h.b16 %v420
    %v794 = vunpack.c.l.b16 %v421
    %v795 = vunpack.c.h.b16 %v421
    %v796 = vunpack.c.l.b16 %v422
    %v797 = vunpack.c.h.b16 %v422
    %v798 = vunpack.c.l.b16 %v423
    %v799 = vunpack.c.h.b16 %v423
    %v800 = vunpack.c.l.b16 %v424
    %v801 = vunpack.c.h.b16 %v424
    %v802 = vunpack.c.l.b16 %v425
    %v803 = vunpack.c.h.b16 %v425
    %v804 = vunpack.c.l.b16 %v426
    %v805 = vunpack.c.h.b16 %v426
    %v806 = vunpack.c.l.b16 %v427
    %v807 = vunpack.c.h.b16 %v427
    %v808 = vunpack.c.l.b16 %v428
    %v809 = vunpack.c.h.b16 %v428
    %v810 = vunpack.c.l.b16 %v429
    %v811 = vunpack.c.h.b16 %v429
    %v812 = vunpack.c.l.b16 %v430
    %v813 = vunpack.c.h.b16 %v430
    %v814 = vunpack.c.l.b16 %v431
    %v815 = vunpack.c.h.b16 %v431
    %v816 = vunpack.c.l.b16 %v432
    %v817 = vunpack.c.h.b16 %v432
    %v818 = vunpack.c.l.b16 %v433
    %v819 = vunpack.c.h.b16 %v433
    %v820 = vunpack.c.l.b16 %v434
    %v821 = vunpack.c.h.b16 %v434
    %v822 = vunpack.c.l.b16 %v435
    %v823 = vunpack.c.h.b16 %v435
    %v824 = vunpack.c.l.b16 %v436
    %v825 = vunpack.c.h.b16 %v436
    %v826 = vunpack.c.l.b16 %v437
    %v827 = vunpack.c.h.b16 %v437
    %v828 = vunpack.c.l.b16 %v438
    %v829 = vunpack.c.h.b16 %v438
    %v830 = vunpack.c.l.b16 %v439
    %v831 = vunpack.c.h.b16 %v439
    %v832 = vunpack.c.l.b16 %v440
    %v833 = vunpack.c.h.b16 %v440
    %v834 = vunpack.c.l.b16 %v441
    %v835 = vunpack.c.h.b16 %v441
    %v836 = vunpack.c.l.b16 %v442
    %v837 = vunpack.c.h.b16 %v442
    %v838 = vunpack.c.l.b16 %v443
    %v839 = vunpack.c.h.b16 %v443
    %v840 = vunpack.c.l.b16 %v444
    %v841 = vunpack.c.h.b16 %v444
    %v842 = vunpack.c.l.b16 %v445
    %v843 = vunpack.c.h.b16 %v445
    %v844 = vunpack.c.l.b16 %v446
    %v845 = vunpack.c.h.b16 %v446
    %v846 = vunpack.c.l.b16 %v447
    %v847 = vunpack.c.h.b16 %v447
    %v848 = vunpack.c.l.b16 %v448
    %v849 = vunpack.c.h.b16 %v448
    %v850 = vunpack.c.l.b16 %v449
    %v851 = vunpack.c.h.b16 %v449
    %v852 = vunpack.c.l.b16 %v450
    %v853 = vunpack.c.h.b16 %v450
    %v854 = vunpack.c.l.b16 %v451
    %v855 = vunpack.c.h.b16 %v451
    %v856 = vunpack.c.l.b16 %v452
    %v857 = vunpack.c.h.b16 %v452
    %v858 = vunpack.c.l.b16 %v453
    %v859 = vunpack.c.h.b16 %v453
    %v860 = vpack.c.b16 %v608, %v604
    %v861 = vpack.c.b16 %v609, %v605
    %v862 = vpack.c.b16 %v610, %v606
    %v863 = vpack.c.b16 %v611, %v607
    %v864 = vpack.c.b16 %v616, %v612
    %v865 = vpack.c.b16 %v617, %v613
    %v866 = vpack.c.b16 %v618, %v614
    %v867 = vpack.c.b16 %v619, %v615
    %v868 = vpack.c.b16 %v624, %v620
    %v869 = vpack.c.b16 %v625, %v621
    %v870 = vpack.c.b16 %v626, %v622
    %v871 = vpack.c.b16 %v627, %v623
    %v872 = vpack.c.b16 %v632, %v628
    %v873 = vpack.c.b16 %v633, %v629
    %v874 = vpack.c.b16 %v634, %v630
    %v875 = vpack.c.b16 %v635, %v631
    %v876 = vpack.c.b16 %v640, %v636
    %v877 = vpack.c.b16 %v641, %v637
    %v878 = vpack.c.b16 %v642, %v638
    %v879 = vpack.c.b16 %v643, %v639
    %v880 = vpack.c.b16 %v648, %v644
    %v881 = vpack.c.b16 %v649, %v645
    %v882 = vpack.c.b16 %v650, %v646
    %v883 = vpack.c.b16 %v651, %v647
    %v884 = vpack.c.b16 %v656, %v652
    %v885 = vpack.c.b16 %v657, %v653
    %v886 = vpack.c.b16 %v658, %v654
    %v887 = vpack.c.b16 %v659, %v655
    %v888 = vpack.c.b16 %v664, %v660
    %v889 = vpack.c.b16 %v665, %v661
    %v890 = vpack.c.b16 %v666, %v662
    %v891 = vpack.c.b16 %v667, %v663
    %v892 = vpack.c.b16 %v672, %v668
    %v893 = vpack.c.b16 %v673, %v669
    %v894 = vpack.c.b16 %v674, %v670
    %v895 = vpack.c.b16 %v675, %v671
    %v896 = vpack.c.b16 %v680, %v676
    %v897 = vpack.c.b16 %v681, %v677
    %v898 = vpack.c.b16 %v682, %v678
    %v899 = vpack.c.b16 %v683, %v679
    %v900 = vpack.c.b16 %v688, %v684
    %v901 = vpack.c.b16 %v689, %v685
    %v902 = vpack.c.b16 %v690, %v686
    %v903 = vpack.c.b16 %v691, %v687
    %v904 = vpack.c.b16 %v696, %v692
    %v905 = vpack.c.b16 %v697, %v693
    %v906 = vpack.c.b16 %v698, %v694
    %v907 = vpack.c.b16 %v699, %v695
    %v908 = vpack.c.b16 %v704, %v700
    %v909 = vpack.c.b16 %v705, %v701
    %v910 = vpack.c.b16 %v706, %v702
    %v911 = vpack.c.b16 %v707, %v703
    %v912 = vpack.c.b16 %v712, %v708
    %v913 = vpack.c.b16 %v713, %v709
    %v914 = vpack.c.b16 %v714, %v710
    %v915 = vpack.c.b16 %v715, %v711
    %v916 = vpack.c.b16 %v720, %v716
    %v917 = vpack.c.b16 %v721, %v717
    %v918 = vpack.c.b16 %v722, %v718
    %v919 = vpack.c.b16 %v723, %v719
    %v920 = vpack.c.b16 %v728, %v724
    %v921 = vpack.c.b16 %v729, %v725
    %v922 = vpack.c.b16 %v730, %v726
    %v923 = vpack.c.b16 %v731, %v727
    %v924 = vpack.c.b16 %v736, %v732
    %v925 = vpack.c.b16 %v737, %v733
    %v926 = vpack.c.b16 %v738, %v734
    %v927 = vpack.c.b16 %v739, %v735
    %v928 = vpack.c.b16 %v744, %v740
    %v929 = vpack.c.b16 %v745, %v741
    %v930 = vpack.c.b16 %v746, %v742
    %v931 = vpack.c.b16 %v747, %v743
    %v932 = vpack.c.b16 %v752, %v748
    %v933 = vpack.c.b16 %v753, %v749
    %v934 = vpack.c.b16 %v754, %v750
    %v935 = vpack.c.b16 %v755, %v751
    %v936 = vpack.c.b16 %v760, %v756
    %v937 = vpack.c.b16 %v761, %v757
    %v938 = vpack.c.b16 %v762, %v758
    %v939 = vpack.c.b16 %v763, %v759
    %v940 = vpack.c.b16 %v768, %v764
    %v941 = vpack.c.b16 %v769, %v765
    %v942 = vpack.c.b16 %v770, %v766
    %v943 = vpack.c.b16 %v771, %v767
    %v944 = vpack.c.b16 %v776, %v772
    %v945 = vpack.c.b16 %v777, %v773
    %v946 = vpack.c.b16 %v778, %v774
    %v947 = vpack.c.b16 %v779, %v775
    %v948 = vpack.c.b16 %v784, %v780
    %v949 = vpack.c.b16 %v785, %v781
    %v950 = vpack.c.b16 %v786, %v782
    %v951 = vpack.c.b16 %v787, %v783
    %v952 = vpack.c.b16 %v792, %v788
    %v953 = vpack.c.b16 %v793, %v789
    %v954 = vpack.c.b16 %v794, %v790
    %v955 = vpack.c.b16 %v795, %v791
    %v956 = vpack.c.b16 %v800, %v796
    %v957 = vpack.c.b16 %v801, %v797
    %v958 = vpack.c.b16 %v802, %v798
    %v959 = vpack.c.b16 %v803, %v799
    %v960 = vpack.c.b16 %v808, %v804
    %v961 = vpack.c.b16 %v809, %v805
    %v962 = vpack.c.b16 %v810, %v806
    %v963 = vpack.c.b16 %v811, %v807
    %v964 = vpack.c.b16 %v816, %v812
    %v965 = vpack.c.b16 %v817, %v813
    %v966 = vpack.c.b16 %v818, %v814
    %v967 = vpack.c.b16 %v819, %v815
    %v968 = vpack.c.b16 %v824, %v820
    %v969 = vpack.c.b16 %v825, %v821
    %v970 = vpack.c.b16 %v826, %v822
    %v971 = vpack.c.b16 %v827, %v823
    %v972 = vpack.c.b16 %v832, %v828
    %v973 = vpack.c.b16 %v833, %v829
    %v974 = vpack.c.b16 %v834, %v830
    %v975 = vpack.c.b16 %v835, %v831
    %v976 = vpack.c.b16 %v840, %v836
    %v977 = vpack.c.b16 %v841, %v837
    %v978 = vpack.c.b16 %v842, %v838
    %v979 = vpack.c.b16 %v843, %v839
    %v980 = vpack.c.b16 %v848, %v844
    %v981 = vpack.c.b16 %v849, %v845
    %v982 = vpack.c.b16 %v850, %v846
    %v983 = vpack.c.b16 %v851, %v847
    %v984 = vpack.c.b16 %v856, %v852
    %v985 = vpack.c.b16 %v857, %v853
    %v986 = vpack.c.b16 %v858, %v854
    %v987 = vpack.c.b16 %v859, %v855
    %1116 = vmatprep.subr.bf16.mxu0 %v889
    %1117 = vmatpush1.bf16.msra.mxu0 %v888
    %1118 = vmatprep.subr.bf16.mxu0 %v885
    %1119 = vmatpush1.bf16.msra.mxu0 %v884
    %1120 = vmatprep.subr.bf16.mxu0 %v881
    %1121 = vmatpush1.bf16.msra.mxu0 %v880
    %1122 = vmatprep.subr.bf16.mxu0 %v877
    %1123 = vmatpush1.bf16.msra.mxu0 %v876
    %1124 = vmatprep.subr.bf16.mxu0 %v873
    %1125 = vmatpush1.bf16.msra.mxu0 %v872
    %1126 = vmatprep.subr.bf16.mxu0 %v869
    %1127 = vmatpush1.bf16.msra.mxu0 %v868
    %1128 = vmatprep.subr.bf16.mxu0 %v865
    %1129 = vmatpush1.bf16.msra.mxu0 %v864
    %1130 = vmatprep.subr.bf16.mxu0 %v861
    %1131 = vmatpush1.bf16.msra.mxu0 %v860
    %1132 = vmatprep.subr.bf16.mxu0 %v921
    %1133 = vmatpush2.bf16.msra.mxu0 %v920
    %1134 = vmatprep.subr.bf16.mxu0 %v917
    %1135 = vmatpush2.bf16.msra.mxu0 %v916
    %1136 = vmatprep.subr.bf16.mxu0 %v913
    %1137 = vmatpush2.bf16.msra.mxu0 %v912
    %1138 = vmatprep.subr.bf16.mxu0 %v909
    %1139 = vmatpush2.bf16.msra.mxu0 %v908
    %1140 = vmatprep.subr.bf16.mxu0 %v905
    %1141 = vmatpush2.bf16.msra.mxu0 %v904
    %1142 = vmatprep.subr.bf16.mxu0 %v901
    %1143 = vmatpush2.bf16.msra.mxu0 %v900
    %1144 = vmatprep.subr.bf16.mxu0 %v897
    %1145 = vmatpush2.bf16.msra.mxu0 %v896
    %1146 = vmatprep.subr.bf16.mxu0 %v893
    %1147 = vmatpush2.bf16.msra.mxu0 %v892
    %1148 = vmatprep.mubr.bf16.mxu0 %v323
    %1149 = vmatmul.mubr.bf16.gmra.mxu0 %v322
    %v1150 = vpop.f32.mrf.mxu0
    %v1151 = vadd.f32 %v459, %v1150
    %v1152 = vpop.f32.mrf.mxu0
    %v1153 = vadd.f32 %v463, %v1152
    %v1154 = vpop.f32.mrf.mxu0
    %v1155 = vpop.f32.mrf.mxu0
    %1156 = vdwg.mxu0
    %1157 = vmatprep.subr.bf16.mxu0 %v953
    %1158 = vmatpush1.bf16.msra.mxu0 %v952
    %1159 = vmatprep.subr.bf16.mxu0 %v949
    %1160 = vmatpush1.bf16.msra.mxu0 %v948
    %1161 = vmatprep.subr.bf16.mxu0 %v945
    %1162 = vmatpush1.bf16.msra.mxu0 %v944
    %1163 = vmatprep.subr.bf16.mxu0 %v941
    %1164 = vmatpush1.bf16.msra.mxu0 %v940
    %1165 = vmatprep.subr.bf16.mxu0 %v937
    %1166 = vmatpush1.bf16.msra.mxu0 %v936
    %1167 = vmatprep.subr.bf16.mxu0 %v933
    %1168 = vmatpush1.bf16.msra.mxu0 %v932
    %1169 = vmatprep.subr.bf16.mxu0 %v929
    %1170 = vmatpush1.bf16.msra.mxu0 %v928
    %1171 = vmatprep.subr.bf16.mxu0 %v925
    %1172 = vmatpush1.bf16.msra.mxu0 %v924
    %1173 = vmatprep.subr.bf16.mxu0 %v985
    %1174 = vmatpush2.bf16.msra.mxu0 %v984
    %1175 = vmatprep.subr.bf16.mxu0 %v981
    %1176 = vmatpush2.bf16.msra.mxu0 %v980
    %1177 = vmatprep.subr.bf16.mxu0 %v977
    %1178 = vmatpush2.bf16.msra.mxu0 %v976
    %1179 = vmatprep.subr.bf16.mxu0 %v973
    %1180 = vmatpush2.bf16.msra.mxu0 %v972
    %1181 = vmatprep.subr.bf16.mxu0 %v969
    %1182 = vmatpush2.bf16.msra.mxu0 %v968
    %1183 = vmatprep.subr.bf16.mxu0 %v965
    %1184 = vmatpush2.bf16.msra.mxu0 %v964
    %1185 = vmatprep.subr.bf16.mxu0 %v961
    %1186 = vmatpush2.bf16.msra.mxu0 %v960
    %1187 = vmatprep.subr.bf16.mxu0 %v957
    %1188 = vmatpush2.bf16.msra.mxu0 %v956
    %1189 = vmatprep.mubr.bf16.mxu0 %v325
    %1190 = vmatmul.mubr.bf16.gmra.mxu0 %v324
    %v1191 = vpop.f32.mrf.mxu0
    %v1192 = vadd.f32 %v1151, %v1191
    %v1193 = vpop.f32.mrf.mxu0
    %v1194 = vadd.f32 %v1153, %v1193
    %v1195 = vpop.f32.mrf.mxu0
    %v1196 = vpop.f32.mrf.mxu0
    %1197 = vdwg.mxu0
    %1198 = vmatprep.subr.bf16.mxu0 %v891
    %1199 = vmatpush1.bf16.msra.mxu0 %v890
    %1200 = vmatprep.subr.bf16.mxu0 %v887
    %1201 = vmatpush1.bf16.msra.mxu0 %v886
    %1202 = vmatprep.subr.bf16.mxu0 %v883
    %1203 = vmatpush1.bf16.msra.mxu0 %v882
    %1204 = vmatprep.subr.bf16.mxu0 %v879
    %1205 = vmatpush1.bf16.msra.mxu0 %v878
    %1206 = vmatprep.subr.bf16.mxu0 %v875
    %1207 = vmatpush1.bf16.msra.mxu0 %v874
    %1208 = vmatprep.subr.bf16.mxu0 %v871
    %1209 = vmatpush1.bf16.msra.mxu0 %v870
    %1210 = vmatprep.subr.bf16.mxu0 %v867
    %1211 = vmatpush1.bf16.msra.mxu0 %v866
    %1212 = vmatprep.subr.bf16.mxu0 %v863
    %1213 = vmatpush1.bf16.msra.mxu0 %v862
    %1214 = vmatprep.subr.bf16.mxu0 %v923
    %1215 = vmatpush2.bf16.msra.mxu0 %v922
    %1216 = vmatprep.subr.bf16.mxu0 %v919
    %1217 = vmatpush2.bf16.msra.mxu0 %v918
    %1218 = vmatprep.subr.bf16.mxu0 %v915
    %1219 = vmatpush2.bf16.msra.mxu0 %v914
    %1220 = vmatprep.subr.bf16.mxu0 %v911
    %1221 = vmatpush2.bf16.msra.mxu0 %v910
    %1222 = vmatprep.subr.bf16.mxu0 %v907
    %1223 = vmatpush2.bf16.msra.mxu0 %v906
    %1224 = vmatprep.subr.bf16.mxu0 %v903
    %1225 = vmatpush2.bf16.msra.mxu0 %v902
    %1226 = vmatprep.subr.bf16.mxu0 %v899
    %1227 = vmatpush2.bf16.msra.mxu0 %v898
    %1228 = vmatprep.subr.bf16.mxu0 %v895
    %1229 = vmatpush2.bf16.msra.mxu0 %v894
    %1230 = vmatprep.mubr.bf16.mxu0 %v323
    %1231 = vmatmul.mubr.bf16.gmra.mxu0 %v322
    %v1232 = vpop.f32.mrf.mxu0
    %v1233 = vadd.f32 %v467, %v1232
    %v1234 = vpop.f32.mrf.mxu0
    %v1235 = vadd.f32 %v471, %v1234
    %v1236 = vpop.f32.mrf.mxu0
    %v1237 = vpop.f32.mrf.mxu0
    %1238 = vdwg.mxu0
    %1239 = vmatprep.subr.bf16.mxu0 %v955
    %1240 = vmatpush1.bf16.msra.mxu0 %v954
    %1241 = vmatprep.subr.bf16.mxu0 %v951
    %1242 = vmatpush1.bf16.msra.mxu0 %v950
    %1243 = vmatprep.subr.bf16.mxu0 %v947
    %1244 = vmatpush1.bf16.msra.mxu0 %v946
    %1245 = vmatprep.subr.bf16.mxu0 %v943
    %1246 = vmatpush1.bf16.msra.mxu0 %v942
    %1247 = vmatprep.subr.bf16.mxu0 %v939
    %1248 = vmatpush1.bf16.msra.mxu0 %v938
    %1249 = vmatprep.subr.bf16.mxu0 %v935
    %1250 = vmatpush1.bf16.msra.mxu0 %v934
    %1251 = vmatprep.subr.bf16.mxu0 %v931
    %1252 = vmatpush1.bf16.msra.mxu0 %v930
    %1253 = vmatprep.subr.bf16.mxu0 %v927
    %1254 = vmatpush1.bf16.msra.mxu0 %v926
    %1255 = vmatprep.subr.bf16.mxu0 %v987
    %1256 = vmatpush2.bf16.msra.mxu0 %v986
    %1257 = vmatprep.subr.bf16.mxu0 %v983
    %1258 = vmatpush2.bf16.msra.mxu0 %v982
    %1259 = vmatprep.subr.bf16.mxu0 %v979
    %1260 = vmatpush2.bf16.msra.mxu0 %v978
    %1261 = vmatprep.subr.bf16.mxu0 %v975
    %1262 = vmatpush2.bf16.msra.mxu0 %v974
    %1263 = vmatprep.subr.bf16.mxu0 %v971
    %1264 = vmatpush2.bf16.msra.mxu0 %v970
    %1265 = vmatprep.subr.bf16.mxu0 %v967
    %1266 = vmatpush2.bf16.msra.mxu0 %v966
    %1267 = vmatprep.subr.bf16.mxu0 %v963
    %1268 = vmatpush2.bf16.msra.mxu0 %v962
    %1269 = vmatprep.subr.bf16.mxu0 %v959
    %1270 = vmatpush2.bf16.msra.mxu0 %v958
    %1271 = vmatprep.mubr.bf16.mxu0 %v325
    %1272 = vmatmul.mubr.bf16.gmra.mxu0 %v324
    %v1273 = vpop.f32.mrf.mxu0
    %v1274 = vadd.f32 %v1233, %v1273
    %v1275 = vpop.f32.mrf.mxu0
    %v1276 = vadd.f32 %v1235, %v1275
    %v1277 = vpop.f32.mrf.mxu0
    %v1278 = vpop.f32.mrf.mxu0
    %1279 = vdwg.mxu0
    %v1280 = vmin.f32 %v1192, 20.0
    %v1281 = vmin.f32 %v1194, 20.0
    %v1282 = vmin.f32 %v1274, 20.0
    %v1283 = vmin.f32 %v1276, 20.0
    %v1284 = vmul.f32 %v1280, 1.442695
    %v1285 = vpow.pop %v1284
    %v1286 = vmul.f32 %v1281, 1.442695
    %v1287 = vpow.pop %v1286
    %v1288 = vmul.f32 %v1282, 1.442695
    %v1289 = vpow.pop %v1288
    %v1290 = vmul.f32 %v1283, 1.442695
    %v1291 = vpow.pop %v1290
    %v1292 = vadd.f32 %v1285, 2.0
    %v1293 = vadd.f32 %v1287, 2.0
    %v1294 = vadd.f32 %v1289, 2.0
    %v1295 = vadd.f32 %v1291, 2.0
    %v1296 = vmul.f32 %v1285, %v1292
    %v1297 = vmul.f32 %v1287, %v1293
    %v1298 = vmul.f32 %v1289, %v1294
    %v1299 = vmul.f32 %v1291, %v1295
    %v1300 = vadd.f32 %v1296, 2.0
    %v1301 = vadd.f32 %v1297, 2.0
    %v1302 = vadd.f32 %v1298, 2.0
    %v1303 = vadd.f32 %v1299, 2.0
    %v1304 = vrcp.pop %v1300
    %v1305 = vrcp.pop %v1301
    %v1306 = vrcp.pop %v1302
    %v1307 = vrcp.pop %v1303
    %v1308 = vmul.f32 %v1296, %v1304
    %v1309 = vmul.f32 %v1297, %v1305
    %v1310 = vmul.f32 %v1298, %v1306
    %v1311 = vmul.f32 %v1299, %v1307
    %v1312 = vmul.f32 %v1192, %v1308
    %v1313 = vmul.f32 %v1194, %v1309
    %v1314 = vmul.f32 %v1274, %v1310
    %v1315 = vmul.f32 %v1276, %v1311
    %vm1316 = vcmp.gt.f32.partialorder %v1192, 20.0
    %vm1317 = vcmp.gt.f32.partialorder %v1194, 20.0
    %vm1318 = vcmp.gt.f32.partialorder %v1274, 20.0
    %vm1319 = vcmp.gt.f32.partialorder %v1276, 20.0
    %v1320 = vsel %vm1316, %v1192, %v1312
    %v1321 = vsel %vm1317, %v1194, %v1313
    %v1322 = vsel %vm1318, %v1274, %v1314
    %v1323 = vsel %vm1319, %v1276, %v1315
    %v1324 = vmin.f32 %v1320, 6.0
    %v1325 = vmin.f32 %v1321, 6.0
    %v1326 = vmin.f32 %v1322, 6.0
    %v1327 = vmin.f32 %v1323, 6.0
    %v1328 = vpack.c.bf16 %v1324, %v1324
    %v1329 = vpack.c.bf16 %v1325, %v1325
    %v1330 = vpack.c.bf16 %v1326, %v1326
    %v1331 = vpack.c.bf16 %v1327, %v1327
    %v1332 = vld [vmem:[#allocation8] sm:$0xff]
    %v1333 = vld [vmem:[#allocation8 + $0x8] sm:$0xff]
    %v1334 = vld [vmem:[#allocation8 + $0x10] sm:$0xff]
    %v1335 = vld [vmem:[#allocation8 + $0x18] sm:$0xff]
    %v1336 = vld [vmem:[#allocation8 + $0x20] sm:$0xff]
    %v1337 = vld [vmem:[#allocation8 + $0x28] sm:$0xff]
    %v1338 = vld [vmem:[#allocation8 + $0x30] sm:$0xff]
    %v1339 = vld [vmem:[#allocation8 + $0x38] sm:$0xff]
    %v1340 = vld [vmem:[#allocation8 + $0x40] sm:$0xff]
    %v1341 = vld [vmem:[#allocation8 + $0x48] sm:$0xff]
    %v1342 = vld [vmem:[#allocation8 + $0x50] sm:$0xff]
    %v1343 = vld [vmem:[#allocation8 + $0x58] sm:$0xff]
    %v1344 = vld [vmem:[#allocation8 + $0x60] sm:$0xff]
    %v1345 = vld [vmem:[#allocation8 + $0x68] sm:$0xff]
    %v1346 = vld [vmem:[#allocation8 + $0x70] sm:$0xff]
    %v1347 = vld [vmem:[#allocation8 + $0x78] sm:$0xff]
    %v1348 = vld [vmem:[#allocation8 + $0x80] sm:$0xff]
    %v1349 = vld [vmem:[#allocation8 + $0x88] sm:$0xff]
    %v1350 = vld [vmem:[#allocation8 + $0x90] sm:$0xff]
    %v1351 = vld [vmem:[#allocation8 + $0x98] sm:$0xff]
    %v1352 = vld [vmem:[#allocation8 + $0xa0] sm:$0xff]
    %v1353 = vld [vmem:[#allocation8 + $0xa8] sm:$0xff]
    %v1354 = vld [vmem:[#allocation8 + $0xb0] sm:$0xff]
    %v1355 = vld [vmem:[#allocation8 + $0xb8] sm:$0xff]
    %v1356 = vld [vmem:[#allocation8 + $0xc0] sm:$0xff]
    %v1357 = vld [vmem:[#allocation8 + $0xc8] sm:$0xff]
    %v1358 = vld [vmem:[#allocation8 + $0xd0] sm:$0xff]
    %v1359 = vld [vmem:[#allocation8 + $0xd8] sm:$0xff]
    %v1360 = vld [vmem:[#allocation8 + $0xe0] sm:$0xff]
    %v1361 = vld [vmem:[#allocation8 + $0xe8] sm:$0xff]
    %v1362 = vld [vmem:[#allocation8 + $0xf0] sm:$0xff]
    %v1363 = vld [vmem:[#allocation8 + $0xf8] sm:$0xff]
    %v1364 = vld [vmem:[#allocation8 + $0x100] sm:$0xff]
    %v1365 = vld [vmem:[#allocation8 + $0x108] sm:$0xff]
    %v1366 = vld [vmem:[#allocation8 + $0x110] sm:$0xff]
    %v1367 = vld [vmem:[#allocation8 + $0x118] sm:$0xff]
    %v1368 = vld [vmem:[#allocation8 + $0x120] sm:$0xff]
    %v1369 = vld [vmem:[#allocation8 + $0x128] sm:$0xff]
    %v1370 = vld [vmem:[#allocation8 + $0x130] sm:$0xff]
    %v1371 = vld [vmem:[#allocation8 + $0x138] sm:$0xff]
    %v1372 = vld [vmem:[#allocation8 + $0x140] sm:$0xff]
    %v1373 = vld [vmem:[#allocation8 + $0x148] sm:$0xff]
    %v1374 = vld [vmem:[#allocation8 + $0x150] sm:$0xff]
    %v1375 = vld [vmem:[#allocation8 + $0x158] sm:$0xff]
    %v1376 = vld [vmem:[#allocation8 + $0x160] sm:$0xff]
    %v1377 = vld [vmem:[#allocation8 + $0x168] sm:$0xff]
    %v1378 = vld [vmem:[#allocation8 + $0x170] sm:$0xff]
    %v1379 = vld [vmem:[#allocation8 + $0x178] sm:$0xff]
    %v1380 = vld [vmem:[#allocation8 + $0x180] sm:$0xff]
    %v1381 = vld [vmem:[#allocation8 + $0x188] sm:$0xff]
    %v1382 = vld [vmem:[#allocation8 + $0x190] sm:$0xff]
    %v1383 = vld [vmem:[#allocation8 + $0x198] sm:$0xff]
    %v1384 = vld [vmem:[#allocation8 + $0x1a0] sm:$0xff]
    %v1385 = vld [vmem:[#allocation8 + $0x1a8] sm:$0xff]
    %v1386 = vld [vmem:[#allocation8 + $0x1b0] sm:$0xff]
    %v1387 = vld [vmem:[#allocation8 + $0x1b8] sm:$0xff]
    %v1388 = vld [vmem:[#allocation8 + $0x1c0] sm:$0xff]
    %v1389 = vld [vmem:[#allocation8 + $0x1c8] sm:$0xff]
    %v1390 = vld [vmem:[#allocation8 + $0x1d0] sm:$0xff]
    %v1391 = vld [vmem:[#allocation8 + $0x1d8] sm:$0xff]
    %v1392 = vld [vmem:[#allocation8 + $0x1e0] sm:$0xff]
    %v1393 = vld [vmem:[#allocation8 + $0x1e8] sm:$0xff]
    %v1394 = vld [vmem:[#allocation8 + $0x1f0] sm:$0xff]
    %v1395 = vld [vmem:[#allocation8 + $0x1f8] sm:$0xff]
    %v1396 = vld [vmem:[#allocation8 + $0x200] sm:$0xff]
    %v1397 = vld [vmem:[#allocation8 + $0x208] sm:$0xff]
    %v1398 = vld [vmem:[#allocation8 + $0x210] sm:$0xff]
    %v1399 = vld [vmem:[#allocation8 + $0x218] sm:$0xff]
    %v1400 = vld [vmem:[#allocation8 + $0x220] sm:$0xff]
    %v1401 = vld [vmem:[#allocation8 + $0x228] sm:$0xff]
    %v1402 = vld [vmem:[#allocation8 + $0x230] sm:$0xff]
    %v1403 = vld [vmem:[#allocation8 + $0x238] sm:$0xff]
    %v1404 = vld [vmem:[#allocation8 + $0x240] sm:$0xff]
    %v1405 = vld [vmem:[#allocation8 + $0x248] sm:$0xff]
    %v1406 = vld [vmem:[#allocation8 + $0x250] sm:$0xff]
    %v1407 = vld [vmem:[#allocation8 + $0x258] sm:$0xff]
    %v1408 = vld [vmem:[#allocation8 + $0x260] sm:$0xff]
    %v1409 = vld [vmem:[#allocation8 + $0x268] sm:$0xff]
    %v1410 = vld [vmem:[#allocation8 + $0x270] sm:$0xff]
    %v1411 = vld [vmem:[#allocation8 + $0x278] sm:$0xff]
    %v1412 = vld [vmem:[#allocation8 + $0x280] sm:$0xff]
    %v1413 = vld [vmem:[#allocation8 + $0x288] sm:$0xff]
    %v1414 = vld [vmem:[#allocation8 + $0x290] sm:$0xff]
    %v1415 = vld [vmem:[#allocation8 + $0x298] sm:$0xff]
    %v1416 = vld [vmem:[#allocation8 + $0x2a0] sm:$0xff]
    %v1417 = vld [vmem:[#allocation8 + $0x2a8] sm:$0xff]
    %v1418 = vld [vmem:[#allocation8 + $0x2b0] sm:$0xff]
    %v1419 = vld [vmem:[#allocation8 + $0x2b8] sm:$0xff]
    %v1420 = vld [vmem:[#allocation8 + $0x2c0] sm:$0xff]
    %v1421 = vld [vmem:[#allocation8 + $0x2c8] sm:$0xff]
    %v1422 = vld [vmem:[#allocation8 + $0x2d0] sm:$0xff]
    %v1423 = vld [vmem:[#allocation8 + $0x2d8] sm:$0xff]
    %v1424 = vld [vmem:[#allocation8 + $0x2e0] sm:$0xff]
    %v1425 = vld [vmem:[#allocation8 + $0x2e8] sm:$0xff]
    %v1426 = vld [vmem:[#allocation8 + $0x2f0] sm:$0xff]
    %v1427 = vld [vmem:[#allocation8 + $0x2f8] sm:$0xff]
    %v1428 = vld [vmem:[#allocation8 + $0x300] sm:$0xff]
    %v1429 = vld [vmem:[#allocation8 + $0x308] sm:$0xff]
    %v1430 = vld [vmem:[#allocation8 + $0x310] sm:$0xff]
    %v1431 = vld [vmem:[#allocation8 + $0x318] sm:$0xff]
    %v1432 = vld [vmem:[#allocation8 + $0x320] sm:$0xff]
    %v1433 = vld [vmem:[#allocation8 + $0x328] sm:$0xff]
    %v1434 = vld [vmem:[#allocation8 + $0x330] sm:$0xff]
    %v1435 = vld [vmem:[#allocation8 + $0x338] sm:$0xff]
    %v1436 = vld [vmem:[#allocation8 + $0x340] sm:$0xff]
    %v1437 = vld [vmem:[#allocation8 + $0x348] sm:$0xff]
    %v1438 = vld [vmem:[#allocation8 + $0x350] sm:$0xff]
    %v1439 = vld [vmem:[#allocation8 + $0x358] sm:$0xff]
    %v1440 = vld [vmem:[#allocation8 + $0x360] sm:$0xff]
    %v1441 = vld [vmem:[#allocation8 + $0x368] sm:$0xff]
    %v1442 = vld [vmem:[#allocation8 + $0x370] sm:$0xff]
    %v1443 = vld [vmem:[#allocation8 + $0x378] sm:$0xff]
    %v1444 = vld [vmem:[#allocation8 + $0x380] sm:$0xff]
    %v1445 = vld [vmem:[#allocation8 + $0x388] sm:$0xff]
    %v1446 = vld [vmem:[#allocation8 + $0x390] sm:$0xff]
    %v1447 = vld [vmem:[#allocation8 + $0x398] sm:$0xff]
    %v1448 = vld [vmem:[#allocation8 + $0x3a0] sm:$0xff]
    %v1449 = vld [vmem:[#allocation8 + $0x3a8] sm:$0xff]
    %v1450 = vld [vmem:[#allocation8 + $0x3b0] sm:$0xff]
    %v1451 = vld [vmem:[#allocation8 + $0x3b8] sm:$0xff]
    %v1452 = vld [vmem:[#allocation8 + $0x3c0] sm:$0xff]
    %v1453 = vld [vmem:[#allocation8 + $0x3c8] sm:$0xff]
    %v1454 = vld [vmem:[#allocation8 + $0x3d0] sm:$0xff]
    %v1455 = vld [vmem:[#allocation8 + $0x3d8] sm:$0xff]
    %v1456 = vld [vmem:[#allocation8 + $0x3e0] sm:$0xff]
    %v1457 = vld [vmem:[#allocation8 + $0x3e8] sm:$0xff]
    %v1458 = vld [vmem:[#allocation8 + $0x3f0] sm:$0xff]
    %v1459 = vld [vmem:[#allocation8 + $0x3f8] sm:$0xff]
    %v1460 = vld [vmem:[%s6] sm:$0xf]
    %v1462 = vlaneseq
    %v1463 = vshrl.u32 %v1462, 7
    %v1464 = vsub.s32 0, %v1463
    %v1465 = vrot.slane %v1460, %v1464
    %v1466 = vlaneseq
    %v1467 = vshrl.u32 %v1466, 7
    %v1468 = vsub.s32 1, %v1467
    %v1469 = vrot.slane %v1460, %v1468
    %v1470 = vlaneseq
    %v1471 = vshrl.u32 %v1470, 7
    %v1472 = vsub.s32 2, %v1471
    %v1473 = vrot.slane %v1460, %v1472
    %v1474 = vlaneseq
    %v1475 = vshrl.u32 %v1474, 7
    %v1476 = vsub.s32 3, %v1475
    %v1477 = vrot.slane %v1460, %v1476
    %v1610 = vunpack.c.l.b16 %v1332
    %v1611 = vunpack.c.h.b16 %v1332
    %v1612 = vunpack.c.l.b16 %v1333
    %v1613 = vunpack.c.h.b16 %v1333
    %v1614 = vunpack.c.l.b16 %v1334
    %v1615 = vunpack.c.h.b16 %v1334
    %v1616 = vunpack.c.l.b16 %v1335
    %v1617 = vunpack.c.h.b16 %v1335
    %v1618 = vunpack.c.l.b16 %v1336
    %v1619 = vunpack.c.h.b16 %v1336
    %v1620 = vunpack.c.l.b16 %v1337
    %v1621 = vunpack.c.h.b16 %v1337
    %v1622 = vunpack.c.l.b16 %v1338
    %v1623 = vunpack.c.h.b16 %v1338
    %v1624 = vunpack.c.l.b16 %v1339
    %v1625 = vunpack.c.h.b16 %v1339
    %v1626 = vunpack.c.l.b16 %v1340
    %v1627 = vunpack.c.h.b16 %v1340
    %v1628 = vunpack.c.l.b16 %v1341
    %v1629 = vunpack.c.h.b16 %v1341
    %v1630 = vunpack.c.l.b16 %v1342
    %v1631 = vunpack.c.h.b16 %v1342
    %v1632 = vunpack.c.l.b16 %v1343
    %v1633 = vunpack.c.h.b16 %v1343
    %v1634 = vunpack.c.l.b16 %v1344
    %v1635 = vunpack.c.h.b16 %v1344
    %v1636 = vunpack.c.l.b16 %v1345
    %v1637 = vunpack.c.h.b16 %v1345
    %v1638 = vunpack.c.l.b16 %v1346
    %v1639 = vunpack.c.h.b16 %v1346
    %v1640 = vunpack.c.l.b16 %v1347
    %v1641 = vunpack.c.h.b16 %v1347
    %v1642 = vunpack.c.l.b16 %v1348
    %v1643 = vunpack.c.h.b16 %v1348
    %v1644 = vunpack.c.l.b16 %v1349
    %v1645 = vunpack.c.h.b16 %v1349
    %v1646 = vunpack.c.l.b16 %v1350
    %v1647 = vunpack.c.h.b16 %v1350
    %v1648 = vunpack.c.l.b16 %v1351
    %v1649 = vunpack.c.h.b16 %v1351
    %v1650 = vunpack.c.l.b16 %v1352
    %v1651 = vunpack.c.h.b16 %v1352
    %v1652 = vunpack.c.l.b16 %v1353
    %v1653 = vunpack.c.h.b16 %v1353
    %v1654 = vunpack.c.l.b16 %v1354
    %v1655 = vunpack.c.h.b16 %v1354
    %v1656 = vunpack.c.l.b16 %v1355
    %v1657 = vunpack.c.h.b16 %v1355
    %v1658 = vunpack.c.l.b16 %v1356
    %v1659 = vunpack.c.h.b16 %v1356
    %v1660 = vunpack.c.l.b16 %v1357
    %v1661 = vunpack.c.h.b16 %v1357
    %v1662 = vunpack.c.l.b16 %v1358
    %v1663 = vunpack.c.h.b16 %v1358
    %v1664 = vunpack.c.l.b16 %v1359
    %v1665 = vunpack.c.h.b16 %v1359
    %v1666 = vunpack.c.l.b16 %v1360
    %v1667 = vunpack.c.h.b16 %v1360
    %v1668 = vunpack.c.l.b16 %v1361
    %v1669 = vunpack.c.h.b16 %v1361
    %v1670 = vunpack.c.l.b16 %v1362
    %v1671 = vunpack.c.h.b16 %v1362
    %v1672 = vunpack.c.l.b16 %v1363
    %v1673 = vunpack.c.h.b16 %v1363
    %v1674 = vunpack.c.l.b16 %v1364
    %v1675 = vunpack.c.h.b16 %v1364
    %v1676 = vunpack.c.l.b16 %v1365
    %v1677 = vunpack.c.h.b16 %v1365
    %v1678 = vunpack.c.l.b16 %v1366
    %v1679 = vunpack.c.h.b16 %v1366
    %v1680 = vunpack.c.l.b16 %v1367
    %v1681 = vunpack.c.h.b16 %v1367
    %v1682 = vunpack.c.l.b16 %v1368
    %v1683 = vunpack.c.h.b16 %v1368
    %v1684 = vunpack.c.l.b16 %v1369
    %v1685 = vunpack.c.h.b16 %v1369
    %v1686 = vunpack.c.l.b16 %v1370
    %v1687 = vunpack.c.h.b16 %v1370
    %v1688 = vunpack.c.l.b16 %v1371
    %v1689 = vunpack.c.h.b16 %v1371
    %v1690 = vunpack.c.l.b16 %v1372
    %v1691 = vunpack.c.h.b16 %v1372
    %v1692 = vunpack.c.l.b16 %v1373
    %v1693 = vunpack.c.h.b16 %v1373
    %v1694 = vunpack.c.l.b16 %v1374
    %v1695 = vunpack.c.h.b16 %v1374
    %v1696 = vunpack.c.l.b16 %v1375
    %v1697 = vunpack.c.h.b16 %v1375
    %v1698 = vunpack.c.l.b16 %v1376
    %v1699 = vunpack.c.h.b16 %v1376
    %v1700 = vunpack.c.l.b16 %v1377
    %v1701 = vunpack.c.h.b16 %v1377
    %v1702 = vunpack.c.l.b16 %v1378
    %v1703 = vunpack.c.h.b16 %v1378
    %v1704 = vunpack.c.l.b16 %v1379
    %v1705 = vunpack.c.h.b16 %v1379
    %v1706 = vunpack.c.l.b16 %v1380
    %v1707 = vunpack.c.h.b16 %v1380
    %v1708 = vunpack.c.l.b16 %v1381
    %v1709 = vunpack.c.h.b16 %v1381
    %v1710 = vunpack.c.l.b16 %v1382
    %v1711 = vunpack.c.h.b16 %v1382
    %v1712 = vunpack.c.l.b16 %v1383
    %v1713 = vunpack.c.h.b16 %v1383
    %v1714 = vunpack.c.l.b16 %v1384
    %v1715 = vunpack.c.h.b16 %v1384
    %v1716 = vunpack.c.l.b16 %v1385
    %v1717 = vunpack.c.h.b16 %v1385
    %v1718 = vunpack.c.l.b16 %v1386
    %v1719 = vunpack.c.h.b16 %v1386
    %v1720 = vunpack.c.l.b16 %v1387
    %v1721 = vunpack.c.h.b16 %v1387
    %v1722 = vunpack.c.l.b16 %v1388
    %v1723 = vunpack.c.h.b16 %v1388
    %v1724 = vunpack.c.l.b16 %v1389
    %v1725 = vunpack.c.h.b16 %v1389
    %v1726 = vunpack.c.l.b16 %v1390
    %v1727 = vunpack.c.h.b16 %v1390
    %v1728 = vunpack.c.l.b16 %v1391
    %v1729 = vunpack.c.h.b16 %v1391
    %v1730 = vunpack.c.l.b16 %v1392
    %v1731 = vunpack.c.h.b16 %v1392
    %v1732 = vunpack.c.l.b16 %v1393
    %v1733 = vunpack.c.h.b16 %v1393
    %v1734 = vunpack.c.l.b16 %v1394
    %v1735 = vunpack.c.h.b16 %v1394
    %v1736 = vunpack.c.l.b16 %v1395
    %v1737 = vunpack.c.h.b16 %v1395
    %v1738 = vunpack.c.l.b16 %v1396
    %v1739 = vunpack.c.h.b16 %v1396
    %v1740 = vunpack.c.l.b16 %v1397
    %v1741 = vunpack.c.h.b16 %v1397
    %v1742 = vunpack.c.l.b16 %v1398
    %v1743 = vunpack.c.h.b16 %v1398
    %v1744 = vunpack.c.l.b16 %v1399
    %v1745 = vunpack.c.h.b16 %v1399
    %v1746 = vunpack.c.l.b16 %v1400
    %v1747 = vunpack.c.h.b16 %v1400
    %v1748 = vunpack.c.l.b16 %v1401
    %v1749 = vunpack.c.h.b16 %v1401
    %v1750 = vunpack.c.l.b16 %v1402
    %v1751 = vunpack.c.h.b16 %v1402
    %v1752 = vunpack.c.l.b16 %v1403
    %v1753 = vunpack.c.h.b16 %v1403
    %v1754 = vunpack.c.l.b16 %v1404
    %v1755 = vunpack.c.h.b16 %v1404
    %v1756 = vunpack.c.l.b16 %v1405
    %v1757 = vunpack.c.h.b16 %v1405
    %v1758 = vunpack.c.l.b16 %v1406
    %v1759 = vunpack.c.h.b16 %v1406
    %v1760 = vunpack.c.l.b16 %v1407
    %v1761 = vunpack.c.h.b16 %v1407
    %v1762 = vunpack.c.l.b16 %v1408
    %v1763 = vunpack.c.h.b16 %v1408
    %v1764 = vunpack.c.l.b16 %v1409
    %v1765 = vunpack.c.h.b16 %v1409
    %v1766 = vunpack.c.l.b16 %v1410
    %v1767 = vunpack.c.h.b16 %v1410
    %v1768 = vunpack.c.l.b16 %v1411
    %v1769 = vunpack.c.h.b16 %v1411
    %v1770 = vunpack.c.l.b16 %v1412
    %v1771 = vunpack.c.h.b16 %v1412
    %v1772 = vunpack.c.l.b16 %v1413
    %v1773 = vunpack.c.h.b16 %v1413
    %v1774 = vunpack.c.l.b16 %v1414
    %v1775 = vunpack.c.h.b16 %v1414
    %v1776 = vunpack.c.l.b16 %v1415
    %v1777 = vunpack.c.h.b16 %v1415
    %v1778 = vunpack.c.l.b16 %v1416
    %v1779 = vunpack.c.h.b16 %v1416
    %v1780 = vunpack.c.l.b16 %v1417
    %v1781 = vunpack.c.h.b16 %v1417
    %v1782 = vunpack.c.l.b16 %v1418
    %v1783 = vunpack.c.h.b16 %v1418
    %v1784 = vunpack.c.l.b16 %v1419
    %v1785 = vunpack.c.h.b16 %v1419
    %v1786 = vunpack.c.l.b16 %v1420
    %v1787 = vunpack.c.h.b16 %v1420
    %v1788 = vunpack.c.l.b16 %v1421
    %v1789 = vunpack.c.h.b16 %v1421
    %v1790 = vunpack.c.l.b16 %v1422
    %v1791 = vunpack.c.h.b16 %v1422
    %v1792 = vunpack.c.l.b16 %v1423
    %v1793 = vunpack.c.h.b16 %v1423
    %v1794 = vunpack.c.l.b16 %v1424
    %v1795 = vunpack.c.h.b16 %v1424
    %v1796 = vunpack.c.l.b16 %v1425
    %v1797 = vunpack.c.h.b16 %v1425
    %v1798 = vunpack.c.l.b16 %v1426
    %v1799 = vunpack.c.h.b16 %v1426
    %v1800 = vunpack.c.l.b16 %v1427
    %v1801 = vunpack.c.h.b16 %v1427
    %v1802 = vunpack.c.l.b16 %v1428
    %v1803 = vunpack.c.h.b16 %v1428
    %v1804 = vunpack.c.l.b16 %v1429
    %v1805 = vunpack.c.h.b16 %v1429
    %v1806 = vunpack.c.l.b16 %v1430
    %v1807 = vunpack.c.h.b16 %v1430
    %v1808 = vunpack.c.l.b16 %v1431
    %v1809 = vunpack.c.h.b16 %v1431
    %v1810 = vunpack.c.l.b16 %v1432
    %v1811 = vunpack.c.h.b16 %v1432
    %v1812 = vunpack.c.l.b16 %v1433
    %v1813 = vunpack.c.h.b16 %v1433
    %v1814 = vunpack.c.l.b16 %v1434
    %v1815 = vunpack.c.h.b16 %v1434
    %v1816 = vunpack.c.l.b16 %v1435
    %v1817 = vunpack.c.h.b16 %v1435
    %v1818 = vunpack.c.l.b16 %v1436
    %v1819 = vunpack.c.h.b16 %v1436
    %v1820 = vunpack.c.l.b16 %v1437
    %v1821 = vunpack.c.h.b16 %v1437
    %v1822 = vunpack.c.l.b16 %v1438
    %v1823 = vunpack.c.h.b16 %v1438
    %v1824 = vunpack.c.l.b16 %v1439
    %v1825 = vunpack.c.h.b16 %v1439
    %v1826 = vunpack.c.l.b16 %v1440
    %v1827 = vunpack.c.h.b16 %v1440
    %v1828 = vunpack.c.l.b16 %v1441
    %v1829 = vunpack.c.h.b16 %v1441
    %v1830 = vunpack.c.l.b16 %v1442
    %v1831 = vunpack.c.h.b16 %v1442
    %v1832 = vunpack.c.l.b16 %v1443
    %v1833 = vunpack.c.h.b16 %v1443
    %v1834 = vunpack.c.l.b16 %v1444
    %v1835 = vunpack.c.h.b16 %v1444
    %v1836 = vunpack.c.l.b16 %v1445
    %v1837 = vunpack.c.h.b16 %v1445
    %v1838 = vunpack.c.l.b16 %v1446
    %v1839 = vunpack.c.h.b16 %v1446
    %v1840 = vunpack.c.l.b16 %v1447
    %v1841 = vunpack.c.h.b16 %v1447
    %v1842 = vunpack.c.l.b16 %v1448
    %v1843 = vunpack.c.h.b16 %v1448
    %v1844 = vunpack.c.l.b16 %v1449
    %v1845 = vunpack.c.h.b16 %v1449
    %v1846 = vunpack.c.l.b16 %v1450
    %v1847 = vunpack.c.h.b16 %v1450
    %v1848 = vunpack.c.l.b16 %v1451
    %v1849 = vunpack.c.h.b16 %v1451
    %v1850 = vunpack.c.l.b16 %v1452
    %v1851 = vunpack.c.h.b16 %v1452
    %v1852 = vunpack.c.l.b16 %v1453
    %v1853 = vunpack.c.h.b16 %v1453
    %v1854 = vunpack.c.l.b16 %v1454
    %v1855 = vunpack.c.h.b16 %v1454
    %v1856 = vunpack.c.l.b16 %v1455
    %v1857 = vunpack.c.h.b16 %v1455
    %v1858 = vunpack.c.l.b16 %v1456
    %v1859 = vunpack.c.h.b16 %v1456
    %v1860 = vunpack.c.l.b16 %v1457
    %v1861 = vunpack.c.h.b16 %v1457
    %v1862 = vunpack.c.l.b16 %v1458
    %v1863 = vunpack.c.h.b16 %v1458
    %v1864 = vunpack.c.l.b16 %v1459
    %v1865 = vunpack.c.h.b16 %v1459
    %v1866 = vpack.c.b16 %v1614, %v1610
    %v1867 = vpack.c.b16 %v1615, %v1611
    %v1868 = vpack.c.b16 %v1616, %v1612
    %v1869 = vpack.c.b16 %v1617, %v1613
    %v1870 = vpack.c.b16 %v1622, %v1618
    %v1871 = vpack.c.b16 %v1623, %v1619
    %v1872 = vpack.c.b16 %v1624, %v1620
    %v1873 = vpack.c.b16 %v1625, %v1621
    %v1874 = vpack.c.b16 %v1630, %v1626
    %v1875 = vpack.c.b16 %v1631, %v1627
    %v1876 = vpack.c.b16 %v1632, %v1628
    %v1877 = vpack.c.b16 %v1633, %v1629
    %v1878 = vpack.c.b16 %v1638, %v1634
    %v1879 = vpack.c.b16 %v1639, %v1635
    %v1880 = vpack.c.b16 %v1640, %v1636
    %v1881 = vpack.c.b16 %v1641, %v1637
    %v1882 = vpack.c.b16 %v1646, %v1642
    %v1883 = vpack.c.b16 %v1647, %v1643
    %v1884 = vpack.c.b16 %v1648, %v1644
    %v1885 = vpack.c.b16 %v1649, %v1645
    %v1886 = vpack.c.b16 %v1654, %v1650
    %v1887 = vpack.c.b16 %v1655, %v1651
    %v1888 = vpack.c.b16 %v1656, %v1652
    %v1889 = vpack.c.b16 %v1657, %v1653
    %v1890 = vpack.c.b16 %v1662, %v1658
    %v1891 = vpack.c.b16 %v1663, %v1659
    %v1892 = vpack.c.b16 %v1664, %v1660
    %v1893 = vpack.c.b16 %v1665, %v1661
    %v1894 = vpack.c.b16 %v1670, %v1666
    %v1895 = vpack.c.b16 %v1671, %v1667
    %v1896 = vpack.c.b16 %v1672, %v1668
    %v1897 = vpack.c.b16 %v1673, %v1669
    %v1898 = vpack.c.b16 %v1678, %v1674
    %v1899 = vpack.c.b16 %v1679, %v1675
    %v1900 = vpack.c.b16 %v1680, %v1676
    %v1901 = vpack.c.b16 %v1681, %v1677
    %v1902 = vpack.c.b16 %v1686, %v1682
    %v1903 = vpack.c.b16 %v1687, %v1683
    %v1904 = vpack.c.b16 %v1688, %v1684
    %v1905 = vpack.c.b16 %v1689, %v1685
    %v1906 = vpack.c.b16 %v1694, %v1690
    %v1907 = vpack.c.b16 %v1695, %v1691
    %v1908 = vpack.c.b16 %v1696, %v1692
    %v1909 = vpack.c.b16 %v1697, %v1693
    %v1910 = vpack.c.b16 %v1702, %v1698
    %v1911 = vpack.c.b16 %v1703, %v1699
    %v1912 = vpack.c.b16 %v1704, %v1700
    %v1913 = vpack.c.b16 %v1705, %v1701
    %v1914 = vpack.c.b16 %v1710, %v1706
    %v1915 = vpack.c.b16 %v1711, %v1707
    %v1916 = vpack.c.b16 %v1712, %v1708
    %v1917 = vpack.c.b16 %v1713, %v1709
    %v1918 = vpack.c.b16 %v1718, %v1714
    %v1919 = vpack.c.b16 %v1719, %v1715
    %v1920 = vpack.c.b16 %v1720, %v1716
    %v1921 = vpack.c.b16 %v1721, %v1717
    %v1922 = vpack.c.b16 %v1726, %v1722
    %v1923 = vpack.c.b16 %v1727, %v1723
    %v1924 = vpack.c.b16 %v1728, %v1724
    %v1925 = vpack.c.b16 %v1729, %v1725
    %v1926 = vpack.c.b16 %v1734, %v1730
    %v1927 = vpack.c.b16 %v1735, %v1731
    %v1928 = vpack.c.b16 %v1736, %v1732
    %v1929 = vpack.c.b16 %v1737, %v1733
    %v1930 = vpack.c.b16 %v1742, %v1738
    %v1931 = vpack.c.b16 %v1743, %v1739
    %v1932 = vpack.c.b16 %v1744, %v1740
    %v1933 = vpack.c.b16 %v1745, %v1741
    %v1934 = vpack.c.b16 %v1750, %v1746
    %v1935 = vpack.c.b16 %v1751, %v1747
    %v1936 = vpack.c.b16 %v1752, %v1748
    %v1937 = vpack.c.b16 %v1753, %v1749
    %v1938 = vpack.c.b16 %v1758, %v1754
    %v1939 = vpack.c.b16 %v1759, %v1755
    %v1940 = vpack.c.b16 %v1760, %v1756
    %v1941 = vpack.c.b16 %v1761, %v1757
    %v1942 = vpack.c.b16 %v1766, %v1762
    %v1943 = vpack.c.b16 %v1767, %v1763
    %v1944 = vpack.c.b16 %v1768, %v1764
    %v1945 = vpack.c.b16 %v1769, %v1765
    %v1946 = vpack.c.b16 %v1774, %v1770
    %v1947 = vpack.c.b16 %v1775, %v1771
    %v1948 = vpack.c.b16 %v1776, %v1772
    %v1949 = vpack.c.b16 %v1777, %v1773
    %v1950 = vpack.c.b16 %v1782, %v1778
    %v1951 = vpack.c.b16 %v1783, %v1779
    %v1952 = vpack.c.b16 %v1784, %v1780
    %v1953 = vpack.c.b16 %v1785, %v1781
    %v1954 = vpack.c.b16 %v1790, %v1786
    %v1955 = vpack.c.b16 %v1791, %v1787
    %v1956 = vpack.c.b16 %v1792, %v1788
    %v1957 = vpack.c.b16 %v1793, %v1789
    %v1958 = vpack.c.b16 %v1798, %v1794
    %v1959 = vpack.c.b16 %v1799, %v1795
    %v1960 = vpack.c.b16 %v1800, %v1796
    %v1961 = vpack.c.b16 %v1801, %v1797
    %v1962 = vpack.c.b16 %v1806, %v1802
    %v1963 = vpack.c.b16 %v1807, %v1803
    %v1964 = vpack.c.b16 %v1808, %v1804
    %v1965 = vpack.c.b16 %v1809, %v1805
    %v1966 = vpack.c.b16 %v1814, %v1810
    %v1967 = vpack.c.b16 %v1815, %v1811
    %v1968 = vpack.c.b16 %v1816, %v1812
    %v1969 = vpack.c.b16 %v1817, %v1813
    %v1970 = vpack.c.b16 %v1822, %v1818
    %v1971 = vpack.c.b16 %v1823, %v1819
    %v1972 = vpack.c.b16 %v1824, %v1820
    %v1973 = vpack.c.b16 %v1825, %v1821
    %v1974 = vpack.c.b16 %v1830, %v1826
    %v1975 = vpack.c.b16 %v1831, %v1827
    %v1976 = vpack.c.b16 %v1832, %v1828
    %v1977 = vpack.c.b16 %v1833, %v1829
    %v1978 = vpack.c.b16 %v1838, %v1834
    %v1979 = vpack.c.b16 %v1839, %v1835
    %v1980 = vpack.c.b16 %v1840, %v1836
    %v1981 = vpack.c.b16 %v1841, %v1837
    %v1982 = vpack.c.b16 %v1846, %v1842
    %v1983 = vpack.c.b16 %v1847, %v1843
    %v1984 = vpack.c.b16 %v1848, %v1844
    %v1985 = vpack.c.b16 %v1849, %v1845
    %v1986 = vpack.c.b16 %v1854, %v1850
    %v1987 = vpack.c.b16 %v1855, %v1851
    %v1988 = vpack.c.b16 %v1856, %v1852
    %v1989 = vpack.c.b16 %v1857, %v1853
    %v1990 = vpack.c.b16 %v1862, %v1858
    %v1991 = vpack.c.b16 %v1863, %v1859
    %v1992 = vpack.c.b16 %v1864, %v1860
    %v1993 = vpack.c.b16 %v1865, %v1861
    %2122 = vmatprep.subr.bf16.mxu0 %v1895
    %2123 = vmatpush1.bf16.msra.mxu0 %v1894
    %2124 = vmatprep.subr.bf16.mxu0 %v1891
    %2125 = vmatpush1.bf16.msra.mxu0 %v1890
    %2126 = vmatprep.subr.bf16.mxu0 %v1887
    %2127 = vmatpush1.bf16.msra.mxu0 %v1886
    %2128 = vmatprep.subr.bf16.mxu0 %v1883
    %2129 = vmatpush1.bf16.msra.mxu0 %v1882
    %2130 = vmatprep.subr.bf16.mxu0 %v1879
    %2131 = vmatpush1.bf16.msra.mxu0 %v1878
    %2132 = vmatprep.subr.bf16.mxu0 %v1875
    %2133 = vmatpush1.bf16.msra.mxu0 %v1874
    %2134 = vmatprep.subr.bf16.mxu0 %v1871
    %2135 = vmatpush1.bf16.msra.mxu0 %v1870
    %2136 = vmatprep.subr.bf16.mxu0 %v1867
    %2137 = vmatpush1.bf16.msra.mxu0 %v1866
    %2138 = vmatprep.subr.bf16.mxu0 %v1927
    %2139 = vmatpush2.bf16.msra.mxu0 %v1926
    %2140 = vmatprep.subr.bf16.mxu0 %v1923
    %2141 = vmatpush2.bf16.msra.mxu0 %v1922
    %2142 = vmatprep.subr.bf16.mxu0 %v1919
    %2143 = vmatpush2.bf16.msra.mxu0 %v1918
    %2144 = vmatprep.subr.bf16.mxu0 %v1915
    %2145 = vmatpush2.bf16.msra.mxu0 %v1914
    %2146 = vmatprep.subr.bf16.mxu0 %v1911
    %2147 = vmatpush2.bf16.msra.mxu0 %v1910
    %2148 = vmatprep.subr.bf16.mxu0 %v1907
    %2149 = vmatpush2.bf16.msra.mxu0 %v1906
    %2150 = vmatprep.subr.bf16.mxu0 %v1903
    %2151 = vmatpush2.bf16.msra.mxu0 %v1902
    %2152 = vmatprep.subr.bf16.mxu0 %v1899
    %2153 = vmatpush2.bf16.msra.mxu0 %v1898
    %2154 = vmatprep.mubr.bf16.mxu0 %v1329
    %2155 = vmatmul.mubr.bf16.gmra.mxu0 %v1328
    %v2156 = vpop.f32.mrf.mxu0
    %v2157 = vadd.f32 %v1465, %v2156
    %v2158 = vpop.f32.mrf.mxu0
    %v2159 = vadd.f32 %v1469, %v2158
    %v2160 = vpop.f32.mrf.mxu0
    %v2161 = vpop.f32.mrf.mxu0
    %2162 = vdwg.mxu0
    %2163 = vmatprep.subr.bf16.mxu0 %v1959
    %2164 = vmatpush1.bf16.msra.mxu0 %v1958
    %2165 = vmatprep.subr.bf16.mxu0 %v1955
    %2166 = vmatpush1.bf16.msra.mxu0 %v1954
    %2167 = vmatprep.subr.bf16.mxu0 %v1951
    %2168 = vmatpush1.bf16.msra.mxu0 %v1950
    %2169 = vmatprep.subr.bf16.mxu0 %v1947
    %2170 = vmatpush1.bf16.msra.mxu0 %v1946
    %2171 = vmatprep.subr.bf16.mxu0 %v1943
    %2172 = vmatpush1.bf16.msra.mxu0 %v1942
    %2173 = vmatprep.subr.bf16.mxu0 %v1939
    %2174 = vmatpush1.bf16.msra.mxu0 %v1938
    %2175 = vmatprep.subr.bf16.mxu0 %v1935
    %2176 = vmatpush1.bf16.msra.mxu0 %v1934
    %2177 = vmatprep.subr.bf16.mxu0 %v1931
    %2178 = vmatpush1.bf16.msra.mxu0 %v1930
    %2179 = vmatprep.subr.bf16.mxu0 %v1991
    %2180 = vmatpush2.bf16.msra.mxu0 %v1990
    %2181 = vmatprep.subr.bf16.mxu0 %v1987
    %2182 = vmatpush2.bf16.msra.mxu0 %v1986
    %2183 = vmatprep.subr.bf16.mxu0 %v1983
    %2184 = vmatpush2.bf16.msra.mxu0 %v1982
    %2185 = vmatprep.subr.bf16.mxu0 %v1979
    %2186 = vmatpush2.bf16.msra.mxu0 %v1978
    %2187 = vmatprep.subr.bf16.mxu0 %v1975
    %2188 = vmatpush2.bf16.msra.mxu0 %v1974
    %2189 = vmatprep.subr.bf16.mxu0 %v1971
    %2190 = vmatpush2.bf16.msra.mxu0 %v1970
    %2191 = vmatprep.subr.bf16.mxu0 %v1967
    %2192 = vmatpush2.bf16.msra.mxu0 %v1966
    %2193 = vmatprep.subr.bf16.mxu0 %v1963
    %2194 = vmatpush2.bf16.msra.mxu0 %v1962
    %2195 = vmatprep.mubr.bf16.mxu0 %v1331
    %2196 = vmatmul.mubr.bf16.gmra.mxu0 %v1330
    %v2197 = vpop.f32.mrf.mxu0
    %v2198 = vadd.f32 %v2157, %v2197
    %v2199 = vpop.f32.mrf.mxu0
    %v2200 = vadd.f32 %v2159, %v2199
    %v2201 = vpop.f32.mrf.mxu0
    %v2202 = vpop.f32.mrf.mxu0
    %2203 = vdwg.mxu0
    %2204 = vmatprep.subr.bf16.mxu0 %v1897
    %2205 = vmatpush1.bf16.msra.mxu0 %v1896
    %2206 = vmatprep.subr.bf16.mxu0 %v1893
    %2207 = vmatpush1.bf16.msra.mxu0 %v1892
    %2208 = vmatprep.subr.bf16.mxu0 %v1889
    %2209 = vmatpush1.bf16.msra.mxu0 %v1888
    %2210 = vmatprep.subr.bf16.mxu0 %v1885
    %2211 = vmatpush1.bf16.msra.mxu0 %v1884
    %2212 = vmatprep.subr.bf16.mxu0 %v1881
    %2213 = vmatpush1.bf16.msra.mxu0 %v1880
    %2214 = vmatprep.subr.bf16.mxu0 %v1877
    %2215 = vmatpush1.bf16.msra.mxu0 %v1876
    %2216 = vmatprep.subr.bf16.mxu0 %v1873
    %2217 = vmatpush1.bf16.msra.mxu0 %v1872
    %2218 = vmatprep.subr.bf16.mxu0 %v1869
    %2219 = vmatpush1.bf16.msra.mxu0 %v1868
    %2220 = vmatprep.subr.bf16.mxu0 %v1929
    %2221 = vmatpush2.bf16.msra.mxu0 %v1928
    %2222 = vmatprep.subr.bf16.mxu0 %v1925
    %2223 = vmatpush2.bf16.msra.mxu0 %v1924
    %2224 = vmatprep.subr.bf16.mxu0 %v1921
    %2225 = vmatpush2.bf16.msra.mxu0 %v1920
    %2226 = vmatprep.subr.bf16.mxu0 %v1917
    %2227 = vmatpush2.bf16.msra.mxu0 %v1916
    %2228 = vmatprep.subr.bf16.mxu0 %v1913
    %2229 = vmatpush2.bf16.msra.mxu0 %v1912
    %2230 = vmatprep.subr.bf16.mxu0 %v1909
    %2231 = vmatpush2.bf16.msra.mxu0 %v1908
    %2232 = vmatprep.subr.bf16.mxu0 %v1905
    %2233 = vmatpush2.bf16.msra.mxu0 %v1904
    %2234 = vmatprep.subr.bf16.mxu0 %v1901
    %2235 = vmatpush2.bf16.msra.mxu0 %v1900
    %2236 = vmatprep.mubr.bf16.mxu0 %v1329
    %2237 = vmatmul.mubr.bf16.gmra.mxu0 %v1328
    %v2238 = vpop.f32.mrf.mxu0
    %v2239 = vadd.f32 %v1473, %v2238
    %v2240 = vpop.f32.mrf.mxu0
    %v2241 = vadd.f32 %v1477, %v2240
    %v2242 = vpop.f32.mrf.mxu0
    %v2243 = vpop.f32.mrf.mxu0
    %2244 = vdwg.mxu0
    %2245 = vmatprep.subr.bf16.mxu0 %v1961
    %2246 = vmatpush1.bf16.msra.mxu0 %v1960
    %2247 = vmatprep.subr.bf16.mxu0 %v1957
    %2248 = vmatpush1.bf16.msra.mxu0 %v1956
    %2249 = vmatprep.subr.bf16.mxu0 %v1953
    %2250 = vmatpush1.bf16.msra.mxu0 %v1952
    %2251 = vmatprep.subr.bf16.mxu0 %v1949
    %2252 = vmatpush1.bf16.msra.mxu0 %v1948
    %2253 = vmatprep.subr.bf16.mxu0 %v1945
    %2254 = vmatpush1.bf16.msra.mxu0 %v1944
    %2255 = vmatprep.subr.bf16.mxu0 %v1941
    %2256 = vmatpush1.bf16.msra.mxu0 %v1940
    %2257 = vmatprep.subr.bf16.mxu0 %v1937
    %2258 = vmatpush1.bf16.msra.mxu0 %v1936
    %2259 = vmatprep.subr.bf16.mxu0 %v1933
    %2260 = vmatpush1.bf16.msra.mxu0 %v1932
    %2261 = vmatprep.subr.bf16.mxu0 %v1993
    %2262 = vmatpush2.bf16.msra.mxu0 %v1992
    %2263 = vmatprep.subr.bf16.mxu0 %v1989
    %2264 = vmatpush2.bf16.msra.mxu0 %v1988
    %2265 = vmatprep.subr.bf16.mxu0 %v1985
    %2266 = vmatpush2.bf16.msra.mxu0 %v1984
    %2267 = vmatprep.subr.bf16.mxu0 %v1981
    %2268 = vmatpush2.bf16.msra.mxu0 %v1980
    %2269 = vmatprep.subr.bf16.mxu0 %v1977
    %2270 = vmatpush2.bf16.msra.mxu0 %v1976
    %2271 = vmatprep.subr.bf16.mxu0 %v1973
    %2272 = vmatpush2.bf16.msra.mxu0 %v1972
    %2273 = vmatprep.subr.bf16.mxu0 %v1969
    %2274 = vmatpush2.bf16.msra.mxu0 %v1968
    %2275 = vmatprep.subr.bf16.mxu0 %v1965
    %2276 = vmatpush2.bf16.msra.mxu0 %v1964
    %2277 = vmatprep.mubr.bf16.mxu0 %v1331
    %2278 = vmatmul.mubr.bf16.gmra.mxu0 %v1330
    %v2279 = vpop.f32.mrf.mxu0
    %v2280 = vadd.f32 %v2239, %v2279
    %v2281 = vpop.f32.mrf.mxu0
    %v2282 = vadd.f32 %v2241, %v2281
    %v2283 = vpop.f32.mrf.mxu0
    %v2284 = vpop.f32.mrf.mxu0
    %2285 = vdwg.mxu0
    %v2286 = vmin.f32 %v2198, 20.0
    %v2287 = vmin.f32 %v2200, 20.0
    %v2288 = vmin.f32 %v2280, 20.0
    %v2289 = vmin.f32 %v2282, 20.0
    %v2290 = vmul.f32 %v2286, 1.442695
    %v2291 = vpow.pop %v2290
    %v2292 = vmul.f32 %v2287, 1.442695
    %v2293 = vpow.pop %v2292
    %v2294 = vmul.f32 %v2288, 1.442695
    %v2295 = vpow.pop %v2294
    %v2296 = vmul.f32 %v2289, 1.442695
    %v2297 = vpow.pop %v2296
    %v2298 = vadd.f32 %v2291, 2.0
    %v2299 = vadd.f32 %v2293, 2.0
    %v2300 = vadd.f32 %v2295, 2.0
    %v2301 = vadd.f32 %v2297, 2.0
    %v2302 = vmul.f32 %v2291, %v2298
    %v2303 = vmul.f32 %v2293, %v2299
    %v2304 = vmul.f32 %v2295, %v2300
    %v2305 = vmul.f32 %v2297, %v2301
    %v2306 = vadd.f32 %v2302, 2.0
    %v2307 = vadd.f32 %v2303, 2.0
    %v2308 = vadd.f32 %v2304, 2.0
    %v2309 = vadd.f32 %v2305, 2.0
    %v2310 = vrcp.pop %v2306
    %v2311 = vrcp.pop %v2307
    %v2312 = vrcp.pop %v2308
    %v2313 = vrcp.pop %v2309
    %v2314 = vmul.f32 %v2302, %v2310
    %v2315 = vmul.f32 %v2303, %v2311
    %v2316 = vmul.f32 %v2304, %v2312
    %v2317 = vmul.f32 %v2305, %v2313
    %v2318 = vmul.f32 %v2198, %v2314
    %v2319 = vmul.f32 %v2200, %v2315
    %v2320 = vmul.f32 %v2280, %v2316
    %v2321 = vmul.f32 %v2282, %v2317
    %vm2322 = vcmp.gt.f32.partialorder %v2198, 20.0
    %vm2323 = vcmp.gt.f32.partialorder %v2200, 20.0
    %vm2324 = vcmp.gt.f32.partialorder %v2280, 20.0
    %vm2325 = vcmp.gt.f32.partialorder %v2282, 20.0
    %v2326 = vsel %vm2322, %v2198, %v2318
    %v2327 = vsel %vm2323, %v2200, %v2319
    %v2328 = vsel %vm2324, %v2280, %v2320
    %v2329 = vsel %vm2325, %v2282, %v2321
    %v2330 = vmin.f32 %v2326, 6.0
    %v2331 = vmin.f32 %v2327, 6.0
    %v2332 = vmin.f32 %v2328, 6.0
    %v2333 = vmin.f32 %v2329, 6.0
    %v2334 = vld [vmem:[#allocation10] sm:$0xf]
    %v2336 = vlaneseq
    %v2337 = vshrl.u32 %v2336, 7
    %v2338 = vsub.s32 0, %v2337
    %v2339 = vrot.slane %v2334, %v2338
    %v2340 = vlaneseq
    %v2341 = vshrl.u32 %v2340, 7
    %v2342 = vsub.s32 1, %v2341
    %v2343 = vrot.slane %v2334, %v2342
    %v2344 = vlaneseq
    %v2345 = vshrl.u32 %v2344, 7
    %v2346 = vsub.s32 2, %v2345
    %v2347 = vrot.slane %v2334, %v2346
    %v2348 = vlaneseq
    %v2349 = vshrl.u32 %v2348, 7
    %v2350 = vsub.s32 3, %v2349
    %v2351 = vrot.slane %v2334, %v2350
    %v2356 = vmul.f32 %v2330, %v2339
    %v2357 = vmul.f32 %v2331, %v2343
    %v2358 = vmul.f32 %v2332, %v2347
    %v2359 = vmul.f32 %v2333, %v2351
    %v2360 = vadd.f32 %v2356, %v2357
    %v2361 = vadd.f32 %v2360, %v2358
    %v2362 = vadd.f32 %v2361, %v2359
    %2363 = vadd.xlane.f32.xlu0 %v2362
    %v2364 = vpop.xlane.xlu0 %2363
    %s2365 = sld [smem:[#allocation2]]
    %v2366 = vstv %s2365
    %v2367 = vadd.f32 %v2364, %v2366
    %vm2368 = vcmask 7168
    %2369 = vst.msk [vmem:[%s9] sm:$0xff] %vm2368, %v2367
    // Predicated region
    $region58: #{tpu_custom_call.1} parent=1 // pred_check
      _
    $region59: #{tpu_custom_call.1} parent=1 // pred_check_branch
      %2371 = sbr.rel (0) target = $region61
    $region60: #{tpu_custom_call.1} parent=1 // pred_region
      _
    $region61: #{tpu_custom_call.1} parent=1 // pred_fallthru
      _
    // Predicated region
    $region62: #{tpu_custom_call.1} parent=1 // pred_check
      _
    $region63: #{tpu_custom_call.1} parent=1 // pred_check_branch
      %2373 = sbr.rel (0) target = $region65
    $region64: #{tpu_custom_call.1} parent=1 // pred_region
      _
    $region65: #{tpu_custom_call.1} parent=1 // pred_fallthru
      _
    %2374 = vsyncpa [#allocation4], 1
    %2375 = vsyncpa [#allocation6], 1
    %2376 = vsyncpa [#allocation9], 1

</llo_original>
